<compile_context>
chip_gen: v5e
topology: v5e:2x2
jax: 0.10.0
libtpu: 0.0.40
codegen_flags: <defaults>
</compile_context>

<pallas_src>
import functools

import jax
import jax.numpy as jnp
from jax.experimental import pallas as pl
from jax.experimental.pallas import tpu as pltpu

EPS = 1e-5  # nn.LayerNorm default


def _layernorm(x, w, b):
    mu = jnp.mean(x, axis=-1, keepdims=True)
    var = jnp.mean(jnp.square(x - mu), axis=-1, keepdims=True)
    return (x - mu) * jax.lax.rsqrt(var + EPS) * w + b


def _erf(x):
    # Abramowitz & Stegun 7.1.26 rational approximation (max abs err ~1.5e-7),
    # built only from elementwise ops guaranteed to lower in Mosaic.
    # TODO(synk): replace with lax.erf if/when erf_p lowering is guaranteed.
    a1, a2, a3, a4, a5 = (0.254829592, -0.284496736, 1.421413741,
                          -1.453152027, 1.061405429)
    p = 0.3275911
    sgn = jnp.where(x >= 0, 1.0, -1.0)
    ax = jnp.abs(x)
    t = 1.0 / (1.0 + p * ax)
    poly = ((((a5 * t + a4) * t + a3) * t + a2) * t + a1) * t
    return sgn * (1.0 - poly * jnp.exp(-ax * ax))


def _gelu_exact(x):
    # PyTorch nn.GELU default (exact, erf-based).
    return 0.5 * x * (1.0 + _erf(x * 0.7071067811865476))


def _vmem_limit_bytes():
    try:
        cap = int(pltpu.get_tpu_info().vmem_capacity_bytes)
    except Exception:
        cap = 64 * 1024 * 1024
    return min(int(cap * 3 // 4), 100 * 1024 * 1024)


def transformer_kernel(num_heads, b_blk, seq_len, hidden_block,
                       x_ref,
                       ln1_w_ref, ln1_b_ref, qkv_w_ref, qkv_b_ref,
                       proj_w_ref, proj_b_ref,
                       ln2_w_ref, ln2_b_ref, fc1_w_ref, fc1_b_ref,
                       fc2_w_ref, fc2_b_ref,
                       lnf_w_ref, lnf_b_ref,
                       out_ref, qkv_scr, attn_scr):
    l = pl.program_id(1)
    n_layers = pl.num_programs(1)

    N, D = out_ref.shape          # N = b_blk * seq_len tokens in this block
    S = seq_len
    H = num_heads
    hd = D // H
    scale = float(hd) ** -0.5
    cd = qkv_w_ref.dtype          # MXU-input / weight compute dtype
    hidden = fc1_w_ref.shape[-1]
    h_blk = hidden_block
    n_chunks = hidden // h_blk

    # At layer 0 copy this batch block's tokens (pipelined by BlockSpec, so
    # block b+1 is prefetched while block b computes) into the resident output
    # block, which also serves as the residual-stream carry across layers.
    @pl.when(l == 0)
    def _init():
        out_ref[...] = x_ref[...]

    x = out_ref[...].astype(jnp.float32)                        # (N, D) f32

    # ---------------- Attention branch ----------------
    h1 = _layernorm(x, ln1_w_ref[0], ln1_b_ref[0])               # (N, D) f32
    # Single qkv GEMM; result lives in a VMEM scratch ref so per-head reads
    # below are ref slices (no full (N, D) f32 q/k/v values kept live).
    qkv_scr[...] = (jnp.dot(h1.astype(cd), qkv_w_ref[0],
                            preferred_element_type=jnp.float32)
                    + qkv_b_ref[0])                              # (N, 3D) f32

    # Loop over batch elements with a real loop (compact program, bounded
    # live ranges); only the small head loop is unrolled.
    # TODO(synk): for v6e/v7x, a head-batched dot_general (heads as a batch
    # dim) and 128-lane-aligned head groups would fill the 256-wide MXU and
    # make the attn_scr stores lane-dense; per-head (S, hd) GEMMs underfill it.
    @pl.loop(0, b_blk)
    def _attend(b):
        r0 = b * S
        if S % 8 == 0:
            r0 = pl.multiple_of(r0, 8)
        rows = pl.ds(r0, S)
        for hh in range(H):
            c0 = hh * hd
            qh = (qkv_scr[rows, c0:c0 + hd] * scale).astype(cd)          # (S,hd)
            kh = qkv_scr[rows, D + c0:D + c0 + hd].astype(cd)            # (S,hd)
            vh = qkv_scr[rows, 2 * D + c0:2 * D + c0 + hd].astype(cd)    # (S,hd)
            s = jnp.dot(qh, kh.T, preferred_element_type=jnp.float32)    # (S,S)
            s = s - jnp.max(s, axis=-1, keepdims=True)
            p = jnp.exp(s)
            denom = jnp.sum(p, axis=-1, keepdims=True)
            o = jnp.dot(p.astype(cd), vh,
                        preferred_element_type=jnp.float32)              # (S,hd)
            attn_scr[rows, c0:c0 + hd] = (
                o * pl.reciprocal(denom, approx=True)).astype(attn_scr.dtype)

    attn = (jnp.dot(attn_scr[...], proj_w_ref[0],
                    preferred_element_type=jnp.float32) + proj_b_ref[0])
    x = x + attn

    # ---------------- MLP branch (tiled over hidden dim) ----------------
    h2 = _layernorm(x, ln2_w_ref[0], ln2_b_ref[0]).astype(cd)    # (N, D)
    acc = x
    for c in range(n_chunks):
        c0 = c * h_blk
        hc = (jnp.dot(h2, fc1_w_ref[0, :, c0:c0 + h_blk],
                      preferred_element_type=jnp.float32)
              + fc1_b_ref[0, :, c0:c0 + h_blk])                  # (N, h_blk)
        hc = _gelu_exact(hc)
        acc = acc + jnp.dot(hc.astype(cd), fc2_w_ref[0, c0:c0 + h_blk, :],
                            preferred_element_type=jnp.float32)
    x = acc + fc2_b_ref[0]

    @pl.when(l < n_layers - 1)
    def _carry():
        out_ref[...] = x.astype(out_ref.dtype)

    @pl.when(l == n_layers - 1)
    def _finalize():
        y = _layernorm(x, lnf_w_ref[...], lnf_b_ref[...])
        out_ref[...] = y.astype(out_ref.dtype)


def transformer_pallas(x, params, num_heads, *, batch_block=None,
                       hidden_block=None, compute_dtype=jnp.float32):
    """Fused ViT Transformer forward.

    batch_block: batch elements per grid step.  Default B//2 (when even) so
      the leading 'parallel' axis has >=2 iterations (v7x megacore); must
      divide B.  Size it so (b_blk*S)-row activations fit comfortably in VMEM.
    hidden_block: MLP hidden-dim chunk (default: full hidden).  Use 512-1024
      on v7x / large models so the (N, 4D) f32 intermediate is never fully
      materialized.  Must divide the hidden dim; prefer multiples of 128.
    compute_dtype: dtype of weights / MXU inputs (f32 or bf16); accumulation
      and the residual stream stay f32.
    """
    B, S, D = x.shape
    depth = params["qkv_w"].shape[0]
    hidden = params["fc1_w"].shape[-1]
    assert D % num_heads == 0, "embed_dim must be divisible by num_heads"

    if batch_block is None:
        batch_block = B // 2 if (B % 2 == 0 and B >= 2) else B
    b_blk = batch_block
    assert B % b_blk == 0, "batch_block must divide batch size"
    num_b_blocks = B // b_blk
    N = b_blk * S

    if hidden_block is None:
        hidden_block = hidden
    assert hidden % hidden_block == 0, "hidden_block must divide hidden dim"

    cd = jnp.dtype(compute_dtype)
    qkv_w = params["qkv_w"].astype(cd)
    proj_w = params["proj_w"].astype(cd)
    fc1_w = params["fc1_w"].astype(cd)
    fc2_w = params["fc2_w"].astype(cd)

    x_flat = x.reshape(B * S, D)   # lane-dense 2D layout; no in-kernel reshape

    layer_map3 = lambda b, l: (l, 0, 0)
    fixed_map2 = lambda b, l: (0, 0)

    in_specs = [
        pl.BlockSpec((N, D), lambda b, l: (b, 0)),  # x (pipelined, resident over l)
        pl.BlockSpec((1, 1, D), layer_map3),        # ln1_w
        pl.BlockSpec((1, 1, D), layer_map3),        # ln1_b
        pl.BlockSpec((1, D, 3 * D), layer_map3),    # qkv_w
        pl.BlockSpec((1, 1, 3 * D), layer_map3),    # qkv_b
        pl.BlockSpec((1, D, D), layer_map3),        # proj_w
        pl.BlockSpec((1, 1, D), layer_map3),        # proj_b
        pl.BlockSpec((1, 1, D), layer_map3),        # ln2_w
        pl.BlockSpec((1, 1, D), layer_map3),        # ln2_b
        pl.BlockSpec((1, D, hidden), layer_map3),   # fc1_w
        pl.BlockSpec((1, 1, hidden), layer_map3),   # fc1_b
        pl.BlockSpec((1, hidden, D), layer_map3),   # fc2_w
        pl.BlockSpec((1, 1, D), layer_map3),        # fc2_b
        pl.BlockSpec((1, D), fixed_map2),           # lnf_w
        pl.BlockSpec((1, D), fixed_map2),           # lnf_b
    ]
    out_spec = pl.BlockSpec((N, D), lambda b, l: (b, 0))

    # Advisory cost estimate for XLA's scheduler.
    hd = D // num_heads
    gemm_flops = 2 * B * S * depth * (3 * D * D + D * D + 2 * D * hidden)
    attn_flops = 4 * B * depth * num_heads * S * S * hd
    trans = B * S * depth * (hidden + num_heads * S)
    w_itm = cd.itemsize
    per_layer_w_bytes = (D * 3 * D + D * D + 2 * D * hidden) * w_itm
    bytes_accessed = (num_b_blocks * depth * per_layer_w_bytes
                      + 2 * B * S * D * x.dtype.itemsize)
    cost = pl.CostEstimate(flops=int(gemm_flops + attn_flops),
                           transcendentals=int(trans),
                           bytes_accessed=int(bytes_accessed))

    kernel = functools.partial(transformer_kernel, num_heads, b_blk, S,
                               hidden_block)

    out_flat = pl.pallas_call(
        kernel,
        out_shape=jax.ShapeDtypeStruct((B * S, D), x.dtype),
        grid_spec=pltpu.PrefetchScalarGridSpec(
            num_scalar_prefetch=0,
            grid=(num_b_blocks, depth),
            in_specs=in_specs,
            out_specs=out_spec,
            scratch_shapes=[
                pltpu.VMEM((N, 3 * D), jnp.float32),  # qkv GEMM result
                pltpu.VMEM((N, D), cd),               # assembled attn heads
            ],
        ),
        compiler_params=pltpu.CompilerParams(
            dimension_semantics=("parallel", "arbitrary"),
            vmem_limit_bytes=_vmem_limit_bytes(),
        ),
        cost_estimate=cost,
    )(x_flat,
      params["ln1_w"], params["ln1_b"], qkv_w, params["qkv_b"],
      proj_w, params["proj_b"], params["ln2_w"], params["ln2_b"],
      fc1_w, params["fc1_b"], fc2_w, params["fc2_b"],
      params["lnf_w"], params["lnf_b"])
    return out_flat.reshape(B, S, D)


def transformer_ref(x, params, num_heads):
    """Pure-JAX reference mirroring the PyTorch ViT Transformer forward."""
    depth = params["qkv_w"].shape[0]
    B, S, D = x.shape
    hd = D // num_heads
    scale = hd ** -0.5

    def ln(y, w, b):
        mu = jnp.mean(y, axis=-1, keepdims=True)
        var = jnp.mean(jnp.square(y - mu), axis=-1, keepdims=True)
        return (y - mu) * jax.lax.rsqrt(var + EPS) * w + b

    for l in range(depth):
        h = ln(x, params["ln1_w"][l], params["ln1_b"][l])
        qkv = h @ params["qkv_w"][l] + params["qkv_b"][l]
        q, k, v = jnp.split(qkv, 3, axis=-1)
        q = q.reshape(B, S, num_heads, hd).transpose(0, 2, 1, 3)
        k = k.reshape(B, S, num_heads, hd).transpose(0, 2, 1, 3)
        v = v.reshape(B, S, num_heads, hd).transpose(0, 2, 1, 3)
        a = jax.nn.softmax(q @ k.transpose(0, 1, 3, 2) * scale, axis=-1)
        o = (a @ v).transpose(0, 2, 1, 3).reshape(B, S, D)
        o = o @ params["proj_w"][l] + params["proj_b"][l]
        x = x + o
        h = ln(x, params["ln2_w"][l], params["ln2_b"][l])
        h = jax.nn.gelu(h @ params["fc1_w"][l] + params["fc1_b"][l],
                        approximate=False)
        h = h @ params["fc2_w"][l] + params["fc2_b"][l]
        x = x + h
    return ln(x, params["lnf_w"], params["lnf_b"])


if __name__ == "__main__":
    # Small but representative: embed_dim=32, depth=2, heads=4, mlp_ratio=4.
    B, S, D = 2, 8, 32
    depth, num_heads, mlp_ratio = 2, 4, 4
    hidden = D * mlp_ratio

    key = jax.random.PRNGKey(0)
    keys = jax.random.split(key, 10)

    def nrm(k, shape, scale=0.02):
        return jax.random.normal(k, shape, dtype=jnp.float32) * scale

    params = dict(
        ln1_w=jnp.ones((depth, 1, D), jnp.float32),
        ln1_b=jnp.zeros((depth, 1, D), jnp.float32),
        qkv_w=nrm(keys[0], (depth, D, 3 * D)),
        qkv_b=nrm(keys[1], (depth, 1, 3 * D)),
        proj_w=nrm(keys[2], (depth, D, D)),
        proj_b=nrm(keys[3], (depth, 1, D)),
        ln2_w=jnp.ones((depth, 1, D), jnp.float32),
        ln2_b=jnp.zeros((depth, 1, D), jnp.float32),
        fc1_w=nrm(keys[4], (depth, D, hidden)),
        fc1_b=nrm(keys[5], (depth, 1, hidden)),
        fc2_w=nrm(keys[6], (depth, hidden, D)),
        fc2_b=nrm(keys[7], (depth, 1, D)),
        lnf_w=jnp.ones((1, D), jnp.float32),
        lnf_b=jnp.zeros((1, D), jnp.float32),
    )
    x = jax.random.normal(keys[8], (B, S, D), dtype=jnp.float32)

    ref = transformer_ref(x, params, num_heads)

    # f32 compute path, default blocking (batch split in two grid steps).
    out = transformer_pallas(x, params, num_heads, compute_dtype=jnp.float32)
    out = jax.block_until_ready(out)
    assert out.shape == (B, S, D)
    assert jnp.allclose(out, ref, atol=5e-3, rtol=5e-3), (
        float(jnp.max(jnp.abs(out - ref))))

    # bf16 weights / MXU inputs with f32 accumulation (the perf config).
    out_bf16 = transformer_pallas(x, params, num_heads,
                                  compute_dtype=jnp.bfloat16)
    out_bf16 = jax.block_until_ready(out_bf16)
    assert jnp.allclose(out_bf16, ref, atol=5e-2, rtol=5e-2), (
        float(jnp.max(jnp.abs(out_bf16 - ref))))

    # Whole-batch block + hidden-dim-chunked MLP (exercises the pl.loop over
    # multiple batch elements and the fc1/fc2 chunk accumulation path).
    out_chunk = transformer_pallas(x, params, num_heads,
                                   batch_block=B, hidden_block=hidden // 2,
                                   compute_dtype=jnp.float32)
    out_chunk = jax.block_until_ready(out_chunk)
    assert jnp.allclose(out_chunk, ref, atol=5e-3, rtol=5e-3), (
        float(jnp.max(jnp.abs(out_chunk - ref))))

    print("KERNEL_OK")
</pallas_src>

<mosaic_0001>
module attributes {stable_mosaic.version = 11 : i64} {
  func.func @transformer_kernel(%arg0: i32, %arg1: i32, %arg2: memref<8x32xf32, #tpu.memory_space<vmem>>, %arg3: memref<1x1x32xf32, #tpu.memory_space<vmem>>, %arg4: memref<1x1x32xf32, #tpu.memory_space<vmem>>, %arg5: memref<1x32x96xf32, #tpu.memory_space<vmem>>, %arg6: memref<1x1x96xf32, #tpu.memory_space<vmem>>, %arg7: memref<1x32x32xf32, #tpu.memory_space<vmem>>, %arg8: memref<1x1x32xf32, #tpu.memory_space<vmem>>, %arg9: memref<1x1x32xf32, #tpu.memory_space<vmem>>, %arg10: memref<1x1x32xf32, #tpu.memory_space<vmem>>, %arg11: memref<1x32x128xf32, #tpu.memory_space<vmem>>, %arg12: memref<1x1x128xf32, #tpu.memory_space<vmem>>, %arg13: memref<1x128x32xf32, #tpu.memory_space<vmem>>, %arg14: memref<1x1x32xf32, #tpu.memory_space<vmem>>, %arg15: memref<1x32xf32, #tpu.memory_space<vmem>>, %arg16: memref<1x32xf32, #tpu.memory_space<vmem>>, %arg17: memref<8x32xf32, #tpu.memory_space<vmem>>, %arg18: memref<8x96xf32, #tpu.memory_space<vmem>>, %arg19: memref<8x32xf32, #tpu.memory_space<vmem>>) attributes {dimension_semantics = [#tpu.dimension_semantics<parallel>, #tpu.dimension_semantics<arbitrary>], iteration_bounds = array<i64: 2, 2>, scalar_prefetch = 0 : i64, scratch_operands = 2 : i64, tpu.core_type = #tpu.core_type<tc>, window_params = [{transform_indices = @transform_0, window_bounds = array<i64: 8, 32>}, {transform_indices = @transform_1, window_bounds = array<i64: 1, 1, 32>}, {transform_indices = @transform_2, window_bounds = array<i64: 1, 1, 32>}, {transform_indices = @transform_3, window_bounds = array<i64: 1, 32, 96>}, {transform_indices = @transform_4, window_bounds = array<i64: 1, 1, 96>}, {transform_indices = @transform_5, window_bounds = array<i64: 1, 32, 32>}, {transform_indices = @transform_6, window_bounds = array<i64: 1, 1, 32>}, {transform_indices = @transform_7, window_bounds = array<i64: 1, 1, 32>}, {transform_indices = @transform_8, window_bounds = array<i64: 1, 1, 32>}, {transform_indices = @transform_9, window_bounds = array<i64: 1, 32, 128>}, {transform_indices = @transform_10, window_bounds = array<i64: 1, 1, 128>}, {transform_indices = @transform_11, window_bounds = array<i64: 1, 128, 32>}, {transform_indices = @transform_12, window_bounds = array<i64: 1, 1, 32>}, {pipeline_mode = #tpu.pipeline_mode<synchronous>, transform_indices = @transform_13, window_bounds = array<i64: 1, 32>}, {pipeline_mode = #tpu.pipeline_mode<synchronous>, transform_indices = @transform_14, window_bounds = array<i64: 1, 32>}, {transform_indices = @transform_15, window_bounds = array<i64: 8, 32>}]} {
    %c0_i32 = arith.constant 0 : i32
    %0 = arith.cmpi eq, %arg1, %c0_i32 : i32
    %1 = arith.extui %0 : i1 to i32
    %c0_i32_0 = arith.constant 0 : i32
    %2 = arith.cmpi ne, %1, %c0_i32_0 : i32
    scf.if %2 {
      %c0_103 = arith.constant 0 : index
      %c0_104 = arith.constant 0 : index
      %231 = vector.load %arg2[%c0_103, %c0_104] : memref<8x32xf32, #tpu.memory_space<vmem>>, vector<8x32xf32>
      %c0_105 = arith.constant 0 : index
      %c0_106 = arith.constant 0 : index
      %232 = vector.load %arg17[%c0_105, %c0_106] : memref<8x32xf32, #tpu.memory_space<vmem>>, vector<8x32xf32>
      tpu.vector_store %arg17[%c0_105, %c0_106], %231 {strides = array<i32>} : memref<8x32xf32, #tpu.memory_space<vmem>>, vector<8x32xf32>,
    } else {
    }
    %c0 = arith.constant 0 : index
    %c0_1 = arith.constant 0 : index
    %3 = vector.load %arg17[%c0, %c0_1] : memref<8x32xf32, #tpu.memory_space<vmem>>, vector<8x32xf32>
    %c0_2 = arith.constant 0 : index
    %c0_3 = arith.constant 0 : index
    %c0_4 = arith.constant 0 : index
    %4 = vector.load %arg3[%c0_2, %c0_3, %c0_4] : memref<1x1x32xf32, #tpu.memory_space<vmem>>, vector<1x1x32xf32>
    %5 = vector.shape_cast %4 : vector<1x1x32xf32> to vector<1x32xf32>
    %c0_5 = arith.constant 0 : index
    %c0_6 = arith.constant 0 : index
    %c0_7 = arith.constant 0 : index
    %6 = vector.load %arg4[%c0_5, %c0_6, %c0_7] : memref<1x1x32xf32, #tpu.memory_space<vmem>>, vector<1x1x32xf32>
    %7 = vector.shape_cast %6 : vector<1x1x32xf32> to vector<1x32xf32>
    %cst = arith.constant dense<0.000000e+00> : vector<8xf32>
    %8 = vector.multi_reduction <add>, %3, %cst [1] : vector<8x32xf32> to vector<8xf32>
    %9 = vector.shape_cast %8 : vector<8xf32> to vector<8x1xf32>
    %cst_8 = arith.constant 3.200000e+01 : f32
    %10 = vector.broadcast %cst_8 : f32 to vector<8x1xf32>
    %11 = arith.divf %9, %10 : vector<8x1xf32>
    %12 = vector.broadcast %11 : vector<8x1xf32> to vector<8x32xf32>
    %13 = arith.subf %3, %12 : vector<8x32xf32>
    %14 = arith.mulf %13, %13 : vector<8x32xf32>
    %cst_9 = arith.constant dense<0.000000e+00> : vector<8xf32>
    %15 = vector.multi_reduction <add>, %14, %cst_9 [1] : vector<8x32xf32> to vector<8xf32>
    %16 = vector.shape_cast %15 : vector<8xf32> to vector<8x1xf32>
    %cst_10 = arith.constant 3.200000e+01 : f32
    %17 = vector.broadcast %cst_10 : f32 to vector<8x1xf32>
    %18 = arith.divf %16, %17 : vector<8x1xf32>
    %19 = vector.broadcast %11 : vector<8x1xf32> to vector<8x32xf32>
    %20 = arith.subf %3, %19 : vector<8x32xf32>
    %cst_11 = arith.constant 9.99999974E-6 : f32
    %21 = vector.broadcast %cst_11 : f32 to vector<8x1xf32>
    %22 = arith.addf %18, %21 : vector<8x1xf32>
    %23 = math.rsqrt %22 : vector<8x1xf32>
    %24 = vector.broadcast %23 : vector<8x1xf32> to vector<8x32xf32>
    %25 = arith.mulf %20, %24 : vector<8x32xf32>
    %26 = vector.broadcast %5 : vector<1x32xf32> to vector<8x32xf32>
    %27 = arith.mulf %25, %26 : vector<8x32xf32>
    %28 = vector.broadcast %7 : vector<1x32xf32> to vector<8x32xf32>
    %29 = arith.addf %27, %28 : vector<8x32xf32>
    %c0_12 = arith.constant 0 : index
    %c0_13 = arith.constant 0 : index
    %c0_14 = arith.constant 0 : index
    %30 = vector.load %arg5[%c0_12, %c0_13, %c0_14] : memref<1x32x96xf32, #tpu.memory_space<vmem>>, vector<1x32x96xf32>
    %31 = vector.shape_cast %30 : vector<1x32x96xf32> to vector<32x96xf32>
    %cst_15 = arith.constant dense<0.000000e+00> : vector<8x96xf32>
    %32 = tpu.matmul %29, %31, %cst_15 {dimension_numbers = #tpu.dot_dimension_numbers<[1], [0], [0], [1], [0, 0, 1, 1], [], []>} : vector<8x32xf32>, vector<32x96xf32>, vector<8x96xf32> -> vector<8x96xf32>
    %c0_16 = arith.constant 0 : index
    %c0_17 = arith.constant 0 : index
    %c0_18 = arith.constant 0 : index
    %33 = vector.load %arg6[%c0_16, %c0_17, %c0_18] : memref<1x1x96xf32, #tpu.memory_space<vmem>>, vector<1x1x96xf32>
    %34 = vector.shape_cast %33 : vector<1x1x96xf32> to vector<1x96xf32>
    %35 = vector.broadcast %34 : vector<1x96xf32> to vector<8x96xf32>
    %36 = arith.addf %32, %35 : vector<8x96xf32>
    %c0_19 = arith.constant 0 : index
    %c0_20 = arith.constant 0 : index
    %37 = vector.load %arg18[%c0_19, %c0_20] : memref<8x96xf32, #tpu.memory_space<vmem>>, vector<8x96xf32>
    tpu.vector_store %arg18[%c0_19, %c0_20], %36 {strides = array<i32>} : memref<8x96xf32, #tpu.memory_space<vmem>>, vector<8x96xf32>,
    %c0_i32_21 = arith.constant 0 : i32
    %c1_i32 = arith.constant 1 : i32
    %38 = arith.muli %c0_i32_21, %c1_i32 : i32
    %c0_i32_22 = arith.constant 0 : i32
    %39 = arith.addi %c0_i32_22, %38 : i32
    %c8_i32 = arith.constant 8 : i32
    %40 = arith.muli %39, %c8_i32 : i32
    %41 = tpu.assume_multiple %40, 8 : i32
    %42 = arith.index_cast %41 : i32 to index
    %c0_23 = arith.constant 0 : index
    %43 = vector.load %arg18[%42, %c0_23] : memref<8x96xf32, #tpu.memory_space<vmem>>, vector<8x8xf32>
    %cst_24 = arith.constant 0.353553385 : f32
    %44 = vector.broadcast %cst_24 : f32 to vector<8x8xf32>
    %45 = arith.mulf %43, %44 : vector<8x8xf32>
    %46 = arith.index_cast %41 : i32 to index
    %c32 = arith.constant 32 : index
    %47 = vector.load %arg18[%46, %c32] : memref<8x96xf32, #tpu.memory_space<vmem>>, vector<8x8xf32>
    %48 = arith.index_cast %41 : i32 to index
    %c64 = arith.constant 64 : index
    %49 = vector.load %arg18[%48, %c64] : memref<8x96xf32, #tpu.memory_space<vmem>>, vector<8x8xf32>
    %50 = tpu.transpose %47, [1, 0] : vector<8x8xf32> -> vector<8x8xf32>
    %cst_25 = arith.constant dense<0.000000e+00> : vector<8x8xf32>
    %51 = tpu.matmul %45, %50, %cst_25 {dimension_numbers = #tpu.dot_dimension_numbers<[1], [0], [0], [1], [0, 0, 1, 1], [], []>} : vector<8x8xf32>, vector<8x8xf32>, vector<8x8xf32> -> vector<8x8xf32>
    %cst_26 = arith.constant dense<0xFF800000> : vector<8xf32>
    %52 = vector.multi_reduction <maximumf>, %51, %cst_26 [1] : vector<8x8xf32> to vector<8xf32>
    %53 = vector.shape_cast %52 : vector<8xf32> to vector<8x1xf32>
    %54 = vector.broadcast %53 : vector<8x1xf32> to vector<8x8xf32>
    %55 = arith.subf %51, %54 : vector<8x8xf32>
    %56 = math.exp %55 : vector<8x8xf32>
    %cst_27 = arith.constant dense<0.000000e+00> : vector<8xf32>
    %57 = vector.multi_reduction <add>, %56, %cst_27 [1] : vector<8x8xf32> to vector<8xf32>
    %58 = vector.shape_cast %57 : vector<8xf32> to vector<8x1xf32>
    %cst_28 = arith.constant dense<0.000000e+00> : vector<8x8xf32>
    %59 = tpu.matmul %56, %49, %cst_28 {dimension_numbers = #tpu.dot_dimension_numbers<[1], [0], [0], [1], [0, 0, 1, 1], [], []>} : vector<8x8xf32>, vector<8x8xf32>, vector<8x8xf32> -> vector<8x8xf32>
    %60 = tpu.reciprocal %58 {approx = true} : vector<8x1xf32> -> vector<8x1xf32>
    %61 = vector.broadcast %60 : vector<8x1xf32> to vector<8x8xf32>
    %62 = arith.mulf %59, %61 : vector<8x8xf32>
    %63 = arith.index_cast %41 : i32 to index
    %c0_29 = arith.constant 0 : index
    %64 = vector.load %arg19[%63, %c0_29] : memref<8x32xf32, #tpu.memory_space<vmem>>, vector<8x8xf32>
    tpu.vector_store %arg19[%63, %c0_29], %62 {strides = array<i32>} : memref<8x32xf32, #tpu.memory_space<vmem>>, vector<8x8xf32>,
    %65 = arith.index_cast %41 : i32 to index
    %c8 = arith.constant 8 : index
    %66 = vector.load %arg18[%65, %c8] : memref<8x96xf32, #tpu.memory_space<vmem>>, vector<8x8xf32>
    %cst_30 = arith.constant 0.353553385 : f32
    %67 = vector.broadcast %cst_30 : f32 to vector<8x8xf32>
    %68 = arith.mulf %66, %67 : vector<8x8xf32>
    %69 = arith.index_cast %41 : i32 to index
    %c40 = arith.constant 40 : index
    %70 = vector.load %arg18[%69, %c40] : memref<8x96xf32, #tpu.memory_space<vmem>>, vector<8x8xf32>
    %71 = arith.index_cast %41 : i32 to index
    %c72 = arith.constant 72 : index
    %72 = vector.load %arg18[%71, %c72] : memref<8x96xf32, #tpu.memory_space<vmem>>, vector<8x8xf32>
    %73 = tpu.transpose %70, [1, 0] : vector<8x8xf32> -> vector<8x8xf32>
    %cst_31 = arith.constant dense<0.000000e+00> : vector<8x8xf32>
    %74 = tpu.matmul %68, %73, %cst_31 {dimension_numbers = #tpu.dot_dimension_numbers<[1], [0], [0], [1], [0, 0, 1, 1], [], []>} : vector<8x8xf32>, vector<8x8xf32>, vector<8x8xf32> -> vector<8x8xf32>
    %cst_32 = arith.constant dense<0xFF800000> : vector<8xf32>
    %75 = vector.multi_reduction <maximumf>, %74, %cst_32 [1] : vector<8x8xf32> to vector<8xf32>
    %76 = vector.shape_cast %75 : vector<8xf32> to vector<8x1xf32>
    %77 = vector.broadcast %76 : vector<8x1xf32> to vector<8x8xf32>
    %78 = arith.subf %74, %77 : vector<8x8xf32>
    %79 = math.exp %78 : vector<8x8xf32>
    %cst_33 = arith.constant dense<0.000000e+00> : vector<8xf32>
    %80 = vector.multi_reduction <add>, %79, %cst_33 [1] : vector<8x8xf32> to vector<8xf32>
    %81 = vector.shape_cast %80 : vector<8xf32> to vector<8x1xf32>
    %cst_34 = arith.constant dense<0.000000e+00> : vector<8x8xf32>
    %82 = tpu.matmul %79, %72, %cst_34 {dimension_numbers = #tpu.dot_dimension_numbers<[1], [0], [0], [1], [0, 0, 1, 1], [], []>} : vector<8x8xf32>, vector<8x8xf32>, vector<8x8xf32> -> vector<8x8xf32>
    %83 = tpu.reciprocal %81 {approx = true} : vector<8x1xf32> -> vector<8x1xf32>
    %84 = vector.broadcast %83 : vector<8x1xf32> to vector<8x8xf32>
    %85 = arith.mulf %82, %84 : vector<8x8xf32>
    %86 = arith.index_cast %41 : i32 to index
    %c8_35 = arith.constant 8 : index
    %87 = vector.load %arg19[%86, %c8_35] : memref<8x32xf32, #tpu.memory_space<vmem>>, vector<8x8xf32>
    tpu.vector_store %arg19[%86, %c8_35], %85 {strides = array<i32>} : memref<8x32xf32, #tpu.memory_space<vmem>>, vector<8x8xf32>,
    %88 = arith.index_cast %41 : i32 to index
    %c16 = arith.constant 16 : index
    %89 = vector.load %arg18[%88, %c16] : memref<8x96xf32, #tpu.memory_space<vmem>>, vector<8x8xf32>
    %cst_36 = arith.constant 0.353553385 : f32
    %90 = vector.broadcast %cst_36 : f32 to vector<8x8xf32>
    %91 = arith.mulf %89, %90 : vector<8x8xf32>
    %92 = arith.index_cast %41 : i32 to index
    %c48 = arith.constant 48 : index
    %93 = vector.load %arg18[%92, %c48] : memref<8x96xf32, #tpu.memory_space<vmem>>, vector<8x8xf32>
    %94 = arith.index_cast %41 : i32 to index
    %c80 = arith.constant 80 : index
    %95 = vector.load %arg18[%94, %c80] : memref<8x96xf32, #tpu.memory_space<vmem>>, vector<8x8xf32>
    %96 = tpu.transpose %93, [1, 0] : vector<8x8xf32> -> vector<8x8xf32>
    %cst_37 = arith.constant dense<0.000000e+00> : vector<8x8xf32>
    %97 = tpu.matmul %91, %96, %cst_37 {dimension_numbers = #tpu.dot_dimension_numbers<[1], [0], [0], [1], [0, 0, 1, 1], [], []>} : vector<8x8xf32>, vector<8x8xf32>, vector<8x8xf32> -> vector<8x8xf32>
    %cst_38 = arith.constant dense<0xFF800000> : vector<8xf32>
    %98 = vector.multi_reduction <maximumf>, %97, %cst_38 [1] : vector<8x8xf32> to vector<8xf32>
    %99 = vector.shape_cast %98 : vector<8xf32> to vector<8x1xf32>
    %100 = vector.broadcast %99 : vector<8x1xf32> to vector<8x8xf32>
    %101 = arith.subf %97, %100 : vector<8x8xf32>
    %102 = math.exp %101 : vector<8x8xf32>
    %cst_39 = arith.constant dense<0.000000e+00> : vector<8xf32>
    %103 = vector.multi_reduction <add>, %102, %cst_39 [1] : vector<8x8xf32> to vector<8xf32>
    %104 = vector.shape_cast %103 : vector<8xf32> to vector<8x1xf32>
    %cst_40 = arith.constant dense<0.000000e+00> : vector<8x8xf32>
    %105 = tpu.matmul %102, %95, %cst_40 {dimension_numbers = #tpu.dot_dimension_numbers<[1], [0], [0], [1], [0, 0, 1, 1], [], []>} : vector<8x8xf32>, vector<8x8xf32>, vector<8x8xf32> -> vector<8x8xf32>
    %106 = tpu.reciprocal %104 {approx = true} : vector<8x1xf32> -> vector<8x1xf32>
    %107 = vector.broadcast %106 : vector<8x1xf32> to vector<8x8xf32>
    %108 = arith.mulf %105, %107 : vector<8x8xf32>
    %109 = arith.index_cast %41 : i32 to index
    %c16_41 = arith.constant 16 : index
    %110 = vector.load %arg19[%109, %c16_41] : memref<8x32xf32, #tpu.memory_space<vmem>>, vector<8x8xf32>
    tpu.vector_store %arg19[%109, %c16_41], %108 {strides = array<i32>} : memref<8x32xf32, #tpu.memory_space<vmem>>, vector<8x8xf32>,
    %111 = arith.index_cast %41 : i32 to index
    %c24 = arith.constant 24 : index
    %112 = vector.load %arg18[%111, %c24] : memref<8x96xf32, #tpu.memory_space<vmem>>, vector<8x8xf32>
    %cst_42 = arith.constant 0.353553385 : f32
    %113 = vector.broadcast %cst_42 : f32 to vector<8x8xf32>
    %114 = arith.mulf %112, %113 : vector<8x8xf32>
    %115 = arith.index_cast %41 : i32 to index
    %c56 = arith.constant 56 : index
    %116 = vector.load %arg18[%115, %c56] : memref<8x96xf32, #tpu.memory_space<vmem>>, vector<8x8xf32>
    %117 = arith.index_cast %41 : i32 to index
    %c88 = arith.constant 88 : index
    %118 = vector.load %arg18[%117, %c88] : memref<8x96xf32, #tpu.memory_space<vmem>>, vector<8x8xf32>
    %119 = tpu.transpose %116, [1, 0] : vector<8x8xf32> -> vector<8x8xf32>
    %cst_43 = arith.constant dense<0.000000e+00> : vector<8x8xf32>
    %120 = tpu.matmul %114, %119, %cst_43 {dimension_numbers = #tpu.dot_dimension_numbers<[1], [0], [0], [1], [0, 0, 1, 1], [], []>} : vector<8x8xf32>, vector<8x8xf32>, vector<8x8xf32> -> vector<8x8xf32>
    %cst_44 = arith.constant dense<0xFF800000> : vector<8xf32>
    %121 = vector.multi_reduction <maximumf>, %120, %cst_44 [1] : vector<8x8xf32> to vector<8xf32>
    %122 = vector.shape_cast %121 : vector<8xf32> to vector<8x1xf32>
    %123 = vector.broadcast %122 : vector<8x1xf32> to vector<8x8xf32>
    %124 = arith.subf %120, %123 : vector<8x8xf32>
    %125 = math.exp %124 : vector<8x8xf32>
    %cst_45 = arith.constant dense<0.000000e+00> : vector<8xf32>
    %126 = vector.multi_reduction <add>, %125, %cst_45 [1] : vector<8x8xf32> to vector<8xf32>
    %127 = vector.shape_cast %126 : vector<8xf32> to vector<8x1xf32>
    %cst_46 = arith.constant dense<0.000000e+00> : vector<8x8xf32>
    %128 = tpu.matmul %125, %118, %cst_46 {dimension_numbers = #tpu.dot_dimension_numbers<[1], [0], [0], [1], [0, 0, 1, 1], [], []>} : vector<8x8xf32>, vector<8x8xf32>, vector<8x8xf32> -> vector<8x8xf32>
    %129 = tpu.reciprocal %127 {approx = true} : vector<8x1xf32> -> vector<8x1xf32>
    %130 = vector.broadcast %129 : vector<8x1xf32> to vector<8x8xf32>
    %131 = arith.mulf %128, %130 : vector<8x8xf32>
    %132 = arith.index_cast %41 : i32 to index
    %c24_47 = arith.constant 24 : index
    %133 = vector.load %arg19[%132, %c24_47] : memref<8x32xf32, #tpu.memory_space<vmem>>, vector<8x8xf32>
    tpu.vector_store %arg19[%132, %c24_47], %131 {strides = array<i32>} : memref<8x32xf32, #tpu.memory_space<vmem>>, vector<8x8xf32>,
    %c1_i32_48 = arith.constant 1 : i32
    %c0_49 = arith.constant 0 : index
    %c0_50 = arith.constant 0 : index
    %134 = vector.load %arg19[%c0_49, %c0_50] : memref<8x32xf32, #tpu.memory_space<vmem>>, vector<8x32xf32>
    %c0_51 = arith.constant 0 : index
    %c0_52 = arith.constant 0 : index
    %c0_53 = arith.constant 0 : index
    %135 = vector.load %arg7[%c0_51, %c0_52, %c0_53] : memref<1x32x32xf32, #tpu.memory_space<vmem>>, vector<1x32x32xf32>
    %136 = vector.shape_cast %135 : vector<1x32x32xf32> to vector<32x32xf32>
    %cst_54 = arith.constant dense<0.000000e+00> : vector<8x32xf32>
    %137 = tpu.matmul %134, %136, %cst_54 {dimension_numbers = #tpu.dot_dimension_numbers<[1], [0], [0], [1], [0, 0, 1, 1], [], []>} : vector<8x32xf32>, vector<32x32xf32>, vector<8x32xf32> -> vector<8x32xf32>
    %c0_55 = arith.constant 0 : index
    %c0_56 = arith.constant 0 : index
    %c0_57 = arith.constant 0 : index
    %138 = vector.load %arg8[%c0_55, %c0_56, %c0_57] : memref<1x1x32xf32, #tpu.memory_space<vmem>>, vector<1x1x32xf32>
    %139 = vector.shape_cast %138 : vector<1x1x32xf32> to vector<1x32xf32>
    %140 = vector.broadcast %139 : vector<1x32xf32> to vector<8x32xf32>
    %141 = arith.addf %137, %140 : vector<8x32xf32>
    %142 = arith.addf %3, %141 : vector<8x32xf32>
    %c0_58 = arith.constant 0 : index
    %c0_59 = arith.constant 0 : index
    %c0_60 = arith.constant 0 : index
    %143 = vector.load %arg9[%c0_58, %c0_59, %c0_60] : memref<1x1x32xf32, #tpu.memory_space<vmem>>, vector<1x1x32xf32>
    %144 = vector.shape_cast %143 : vector<1x1x32xf32> to vector<1x32xf32>
    %c0_61 = arith.constant 0 : index
    %c0_62 = arith.constant 0 : index
    %c0_63 = arith.constant 0 : index
    %145 = vector.load %arg10[%c0_61, %c0_62, %c0_63] : memref<1x1x32xf32, #tpu.memory_space<vmem>>, vector<1x1x32xf32>
    %146 = vector.shape_cast %145 : vector<1x1x32xf32> to vector<1x32xf32>
    %cst_64 = arith.constant dense<0.000000e+00> : vector<8xf32>
    %147 = vector.multi_reduction <add>, %142, %cst_64 [1] : vector<8x32xf32> to vector<8xf32>
    %148 = vector.shape_cast %147 : vector<8xf32> to vector<8x1xf32>
    %cst_65 = arith.constant 3.200000e+01 : f32
    %149 = vector.broadcast %cst_65 : f32 to vector<8x1xf32>
    %150 = arith.divf %148, %149 : vector<8x1xf32>
    %151 = vector.broadcast %150 : vector<8x1xf32> to vector<8x32xf32>
    %152 = arith.subf %142, %151 : vector<8x32xf32>
    %153 = arith.mulf %152, %152 : vector<8x32xf32>
    %cst_66 = arith.constant dense<0.000000e+00> : vector<8xf32>
    %154 = vector.multi_reduction <add>, %153, %cst_66 [1] : vector<8x32xf32> to vector<8xf32>
    %155 = vector.shape_cast %154 : vector<8xf32> to vector<8x1xf32>
    %cst_67 = arith.constant 3.200000e+01 : f32
    %156 = vector.broadcast %cst_67 : f32 to vector<8x1xf32>
    %157 = arith.divf %155, %156 : vector<8x1xf32>
    %158 = vector.broadcast %150 : vector<8x1xf32> to vector<8x32xf32>
    %159 = arith.subf %142, %158 : vector<8x32xf32>
    %cst_68 = arith.constant 9.99999974E-6 : f32
    %160 = vector.broadcast %cst_68 : f32 to vector<8x1xf32>
    %161 = arith.addf %157, %160 : vector<8x1xf32>
    %162 = math.rsqrt %161 : vector<8x1xf32>
    %163 = vector.broadcast %162 : vector<8x1xf32> to vector<8x32xf32>
    %164 = arith.mulf %159, %163 : vector<8x32xf32>
    %165 = vector.broadcast %144 : vector<1x32xf32> to vector<8x32xf32>
    %166 = arith.mulf %164, %165 : vector<8x32xf32>
    %167 = vector.broadcast %146 : vector<1x32xf32> to vector<8x32xf32>
    %168 = arith.addf %166, %167 : vector<8x32xf32>
    %c0_69 = arith.constant 0 : index
    %c0_70 = arith.constant 0 : index
    %c0_71 = arith.constant 0 : index
    %169 = vector.load %arg11[%c0_69, %c0_70, %c0_71] : memref<1x32x128xf32, #tpu.memory_space<vmem>>, vector<1x32x128xf32>
    %170 = vector.shape_cast %169 : vector<1x32x128xf32> to vector<32x128xf32>
    %cst_72 = arith.constant dense<0.000000e+00> : vector<8x128xf32>
    %171 = tpu.matmul %168, %170, %cst_72 {dimension_numbers = #tpu.dot_dimension_numbers<[1], [0], [0], [1], [0, 0, 1, 1], [], []>} : vector<8x32xf32>, vector<32x128xf32>, vector<8x128xf32> -> vector<8x128xf32>
    %c0_73 = arith.constant 0 : index
    %c0_74 = arith.constant 0 : index
    %c0_75 = arith.constant 0 : index
    %172 = vector.load %arg12[%c0_73, %c0_74, %c0_75] : memref<1x1x128xf32, #tpu.memory_space<vmem>>, vector<1x1x128xf32>
    %173 = vector.shape_cast %172 : vector<1x1x128xf32> to vector<1x128xf32>
    %174 = vector.broadcast %173 : vector<1x128xf32> to vector<8x128xf32>
    %175 = arith.addf %171, %174 : vector<8x128xf32>
    %cst_76 = arith.constant 5.000000e-01 : f32
    %176 = vector.broadcast %cst_76 : f32 to vector<8x128xf32>
    %177 = arith.mulf %176, %175 : vector<8x128xf32>
    %cst_77 = arith.constant 0.707106769 : f32
    %178 = vector.broadcast %cst_77 : f32 to vector<8x128xf32>
    %179 = arith.mulf %175, %178 : vector<8x128xf32>
    %cst_78 = arith.constant 0.000000e+00 : f32
    %180 = vector.broadcast %cst_78 : f32 to vector<8x128xf32>
    %181 = arith.cmpf oge, %179, %180 : vector<8x128xf32>
    %cst_79 = arith.constant 1.000000e+00 : f32
    %cst_80 = arith.constant -1.000000e+00 : f32
    %182 = vector.broadcast %cst_79 : f32 to vector<8x128xf32>
    %183 = vector.broadcast %cst_80 : f32 to vector<8x128xf32>
    %184 = arith.select %181, %182, %183 : vector<8x128xi1>, vector<8x128xf32>
    %185 = math.absf %179 : vector<8x128xf32>
    %cst_81 = arith.constant 0.327591091 : f32
    %186 = vector.broadcast %cst_81 : f32 to vector<8x128xf32>
    %187 = arith.mulf %186, %185 : vector<8x128xf32>
    %cst_82 = arith.constant 1.000000e+00 : f32
    %188 = vector.broadcast %cst_82 : f32 to vector<8x128xf32>
    %189 = arith.addf %188, %187 : vector<8x128xf32>
    %cst_83 = arith.constant 1.000000e+00 : f32
    %190 = vector.broadcast %cst_83 : f32 to vector<8x128xf32>
    %191 = arith.divf %190, %189 : vector<8x128xf32>
    %cst_84 = arith.constant 1.06140542 : f32
    %192 = vector.broadcast %cst_84 : f32 to vector<8x128xf32>
    %193 = arith.mulf %192, %191 : vector<8x128xf32>
    %cst_85 = arith.constant -1.45315206 : f32
    %194 = vector.broadcast %cst_85 : f32 to vector<8x128xf32>
    %195 = arith.addf %193, %194 : vector<8x128xf32>
    %196 = arith.mulf %195, %191 : vector<8x128xf32>
    %cst_86 = arith.constant 1.42141378 : f32
    %197 = vector.broadcast %cst_86 : f32 to vector<8x128xf32>
    %198 = arith.addf %196, %197 : vector<8x128xf32>
    %199 = arith.mulf %198, %191 : vector<8x128xf32>
    %cst_87 = arith.constant -0.284496725 : f32
    %200 = vector.broadcast %cst_87 : f32 to vector<8x128xf32>
    %201 = arith.addf %199, %200 : vector<8x128xf32>
    %202 = arith.mulf %201, %191 : vector<8x128xf32>
    %cst_88 = arith.constant 0.254829586 : f32
    %203 = vector.broadcast %cst_88 : f32 to vector<8x128xf32>
    %204 = arith.addf %202, %203 : vector<8x128xf32>
    %205 = arith.mulf %204, %191 : vector<8x128xf32>
    %cst_89 = arith.constant 0.000000e+00 : f32
    %206 = vector.broadcast %cst_89 : f32 to vector<8x128xf32>
    %207 = arith.subf %206, %185 : vector<8x128xf32>
    %208 = arith.mulf %207, %185 : vector<8x128xf32>
    %209 = math.exp %208 : vector<8x128xf32>
    %210 = arith.mulf %205, %209 : vector<8x128xf32>
    %cst_90 = arith.constant 1.000000e+00 : f32
    %211 = vector.broadcast %cst_90 : f32 to vector<8x128xf32>
    %212 = arith.subf %211, %210 : vector<8x128xf32>
    %213 = arith.mulf %184, %212 : vector<8x128xf32>
    %cst_91 = arith.constant 1.000000e+00 : f32
    %214 = vector.broadcast %cst_91 : f32 to vector<8x128xf32>
    %215 = arith.addf %214, %213 : vector<8x128xf32>
    %216 = arith.mulf %177, %215 : vector<8x128xf32>
    %c0_92 = arith.constant 0 : index
    %c0_93 = arith.constant 0 : index
    %c0_94 = arith.constant 0 : index
    %217 = vector.load %arg13[%c0_92, %c0_93, %c0_94] : memref<1x128x32xf32, #tpu.memory_space<vmem>>, vector<1x128x32xf32>
    %218 = vector.shape_cast %217 : vector<1x128x32xf32> to vector<128x32xf32>
    %cst_95 = arith.constant dense<0.000000e+00> : vector<8x32xf32>
    %219 = tpu.matmul %216, %218, %cst_95 {dimension_numbers = #tpu.dot_dimension_numbers<[1], [0], [0], [1], [0, 0, 1, 1], [], []>} : vector<8x128xf32>, vector<128x32xf32>, vector<8x32xf32> -> vector<8x32xf32>
    %220 = arith.addf %142, %219 : vector<8x32xf32>
    %c0_96 = arith.constant 0 : index
    %c0_97 = arith.constant 0 : index
    %c0_98 = arith.constant 0 : index
    %221 = vector.load %arg14[%c0_96, %c0_97, %c0_98] : memref<1x1x32xf32, #tpu.memory_space<vmem>>, vector<1x1x32xf32>
    %222 = vector.shape_cast %221 : vector<1x1x32xf32> to vector<1x32xf32>
    %223 = vector.broadcast %222 : vector<1x32xf32> to vector<8x32xf32>
    %224 = arith.addf %220, %223 : vector<8x32xf32>
    %c1_i32_99 = arith.constant 1 : i32
    %225 = arith.cmpi slt, %arg1, %c1_i32_99 : i32
    %226 = arith.extui %225 : i1 to i32
    %c0_i32_100 = arith.constant 0 : i32
    %227 = arith.cmpi ne, %226, %c0_i32_100 : i32
    scf.if %227 {
      %c0_103 = arith.constant 0 : index
      %c0_104 = arith.constant 0 : index
      %231 = vector.load %arg17[%c0_103, %c0_104] : memref<8x32xf32, #tpu.memory_space<vmem>>, vector<8x32xf32>
      tpu.vector_store %arg17[%c0_103, %c0_104], %224 {strides = array<i32>} : memref<8x32xf32, #tpu.memory_space<vmem>>, vector<8x32xf32>,
    } else {
    }
    %c1_i32_101 = arith.constant 1 : i32
    %228 = arith.cmpi eq, %arg1, %c1_i32_101 : i32
    %229 = arith.extui %228 : i1 to i32
    %c0_i32_102 = arith.constant 0 : i32
    %230 = arith.cmpi ne, %229, %c0_i32_102 : i32
    scf.if %230 {
      %c0_103 = arith.constant 0 : index
      %c0_104 = arith.constant 0 : index
      %231 = vector.load %arg15[%c0_103, %c0_104] : memref<1x32xf32, #tpu.memory_space<vmem>>, vector<1x32xf32>
      %c0_105 = arith.constant 0 : index
      %c0_106 = arith.constant 0 : index
      %232 = vector.load %arg16[%c0_105, %c0_106] : memref<1x32xf32, #tpu.memory_space<vmem>>, vector<1x32xf32>
      %cst_107 = arith.constant dense<0.000000e+00> : vector<8xf32>
      %233 = vector.multi_reduction <add>, %224, %cst_107 [1] : vector<8x32xf32> to vector<8xf32>
      %234 = vector.shape_cast %233 : vector<8xf32> to vector<8x1xf32>
      %cst_108 = arith.constant 3.200000e+01 : f32
      %235 = vector.broadcast %cst_108 : f32 to vector<8x1xf32>
      %236 = arith.divf %234, %235 : vector<8x1xf32>
      %237 = vector.broadcast %236 : vector<8x1xf32> to vector<8x32xf32>
      %238 = arith.subf %224, %237 : vector<8x32xf32>
      %239 = arith.mulf %238, %238 : vector<8x32xf32>
      %cst_109 = arith.constant dense<0.000000e+00> : vector<8xf32>
      %240 = vector.multi_reduction <add>, %239, %cst_109 [1] : vector<8x32xf32> to vector<8xf32>
      %241 = vector.shape_cast %240 : vector<8xf32> to vector<8x1xf32>
      %cst_110 = arith.constant 3.200000e+01 : f32
      %242 = vector.broadcast %cst_110 : f32 to vector<8x1xf32>
      %243 = arith.divf %241, %242 : vector<8x1xf32>
      %244 = vector.broadcast %236 : vector<8x1xf32> to vector<8x32xf32>
      %245 = arith.subf %224, %244 : vector<8x32xf32>
      %cst_111 = arith.constant 9.99999974E-6 : f32
      %246 = vector.broadcast %cst_111 : f32 to vector<8x1xf32>
      %247 = arith.addf %243, %246 : vector<8x1xf32>
      %248 = math.rsqrt %247 : vector<8x1xf32>
      %249 = vector.broadcast %248 : vector<8x1xf32> to vector<8x32xf32>
      %250 = arith.mulf %245, %249 : vector<8x32xf32>
      %251 = vector.broadcast %231 : vector<1x32xf32> to vector<8x32xf32>
      %252 = arith.mulf %250, %251 : vector<8x32xf32>
      %253 = vector.broadcast %232 : vector<1x32xf32> to vector<8x32xf32>
      %254 = arith.addf %252, %253 : vector<8x32xf32>
      %c0_112 = arith.constant 0 : index
      %c0_113 = arith.constant 0 : index
      %255 = vector.load %arg17[%c0_112, %c0_113] : memref<8x32xf32, #tpu.memory_space<vmem>>, vector<8x32xf32>
      tpu.vector_store %arg17[%c0_112, %c0_113], %254 {strides = array<i32>} : memref<8x32xf32, #tpu.memory_space<vmem>>, vector<8x32xf32>,
    } else {
    }
    return
  }
  func.func @transform_0(%arg0: i32, %arg1: i32) -> (i32, i32) {
    %c0_i32 = arith.constant 0 : i32
    %c0_i32_0 = arith.constant 0 : i32
    return %arg0, %c0_i32 : i32, i32
  }
  func.func @transform_1(%arg0: i32, %arg1: i32) -> (i32, i32, i32) {
    %c0_i32 = arith.constant 0 : i32
    %c0_i32_0 = arith.constant 0 : i32
    %c0_i32_1 = arith.constant 0 : i32
    return %arg1, %c0_i32, %c0_i32_0 : i32, i32, i32
  }
  func.func @transform_2(%arg0: i32, %arg1: i32) -> (i32, i32, i32) {
    %c0_i32 = arith.constant 0 : i32
    %c0_i32_0 = arith.constant 0 : i32
    %c0_i32_1 = arith.constant 0 : i32
    return %arg1, %c0_i32, %c0_i32_0 : i32, i32, i32
  }
  func.func @transform_3(%arg0: i32, %arg1: i32) -> (i32, i32, i32) {
    %c0_i32 = arith.constant 0 : i32
    %c0_i32_0 = arith.constant 0 : i32
    %c0_i32_1 = arith.constant 0 : i32
    return %arg1, %c0_i32, %c0_i32_0 : i32, i32, i32
  }
  func.func @transform_4(%arg0: i32, %arg1: i32) -> (i32, i32, i32) {
    %c0_i32 = arith.constant 0 : i32
    %c0_i32_0 = arith.constant 0 : i32
    %c0_i32_1 = arith.constant 0 : i32
    return %arg1, %c0_i32, %c0_i32_0 : i32, i32, i32
  }
  func.func @transform_5(%arg0: i32, %arg1: i32) -> (i32, i32, i32) {
    %c0_i32 = arith.constant 0 : i32
    %c0_i32_0 = arith.constant 0 : i32
    %c0_i32_1 = arith.constant 0 : i32
    return %arg1, %c0_i32, %c0_i32_0 : i32, i32, i32
  }
  func.func @transform_6(%arg0: i32, %arg1: i32) -> (i32, i32, i32) {
    %c0_i32 = arith.constant 0 : i32
    %c0_i32_0 = arith.constant 0 : i32
    %c0_i32_1 = arith.constant 0 : i32
    return %arg1, %c0_i32, %c0_i32_0 : i32, i32, i32
  }
  func.func @transform_7(%arg0: i32, %arg1: i32) -> (i32, i32, i32) {
    %c0_i32 = arith.constant 0 : i32
    %c0_i32_0 = arith.constant 0 : i32
    %c0_i32_1 = arith.constant 0 : i32
    return %arg1, %c0_i32, %c0_i32_0 : i32, i32, i32
  }
  func.func @transform_8(%arg0: i32, %arg1: i32) -> (i32, i32, i32) {
    %c0_i32 = arith.constant 0 : i32
    %c0_i32_0 = arith.constant 0 : i32
    %c0_i32_1 = arith.constant 0 : i32
    return %arg1, %c0_i32, %c0_i32_0 : i32, i32, i32
  }
  func.func @transform_9(%arg0: i32, %arg1: i32) -> (i32, i32, i32) {
    %c0_i32 = arith.constant 0 : i32
    %c0_i32_0 = arith.constant 0 : i32
    %c0_i32_1 = arith.constant 0 : i32
    return %arg1, %c0_i32, %c0_i32_0 : i32, i32, i32
  }
  func.func @transform_10(%arg0: i32, %arg1: i32) -> (i32, i32, i32) {
    %c0_i32 = arith.constant 0 : i32
    %c0_i32_0 = arith.constant 0 : i32
    %c0_i32_1 = arith.constant 0 : i32
    return %arg1, %c0_i32, %c0_i32_0 : i32, i32, i32
  }
  func.func @transform_11(%arg0: i32, %arg1: i32) -> (i32, i32, i32) {
    %c0_i32 = arith.constant 0 : i32
    %c0_i32_0 = arith.constant 0 : i32
    %c0_i32_1 = arith.constant 0 : i32
    return %arg1, %c0_i32, %c0_i32_0 : i32, i32, i32
  }
  func.func @transform_12(%arg0: i32, %arg1: i32) -> (i32, i32, i32) {
    %c0_i32 = arith.constant 0 : i32
    %c0_i32_0 = arith.constant 0 : i32
    %c0_i32_1 = arith.constant 0 : i32
    return %arg1, %c0_i32, %c0_i32_0 : i32, i32, i32
  }
  func.func @transform_13(%arg0: i32, %arg1: i32) -> (i32, i32) {
    %c0_i32 = arith.constant 0 : i32
    %c0_i32_0 = arith.constant 0 : i32
    %c0_i32_1 = arith.constant 0 : i32
    return %c0_i32, %c0_i32_0 : i32, i32
  }
  func.func @transform_14(%arg0: i32, %arg1: i32) -> (i32, i32) {
    %c0_i32 = arith.constant 0 : i32
    %c0_i32_0 = arith.constant 0 : i32
    %c0_i32_1 = arith.constant 0 : i32
    return %c0_i32, %c0_i32_0 : i32, i32
  }
  func.func @transform_15(%arg0: i32, %arg1: i32) -> (i32, i32) {
    %c0_i32 = arith.constant 0 : i32
    %c0_i32_0 = arith.constant 0 : i32
    return %arg0, %c0_i32 : i32, i32
  }
}

</mosaic_0001>

<llo_original>
// kernel: tpu_custom_call.1
$region0: #{tpu_custom_call.1}
  #allocation0 [shape = 'u32[]', space=smem, size = 0x4, offset = 0x4, fixed_abs, tag = 'smem constant byte address 0x4 - core index']
  #allocation1 [shape = 'u32[72,128]{1,0:T(1,128)}', space=vmem, size = 0x9000, scoped, tag = 'internal scratch']
  #allocation2 [shape = 'f32[8,96]{1,0:T(8,128)}', space=vmem, size = 0x1000, scoped, tag = 'scratch operand']
  #allocation3 [shape = 'f32[8,32]{1,0:T(8,128)}', space=vmem, size = 0x1000, scoped, tag = 'scratch operand']
  %s0 = inlined_call_operand.vmem [shape: f32[16,32], index: 0, kind: input, shape index: {}]
  %s1 = inlined_call_operand.vmem [shape: f32[2,1,32], index: 1, kind: input, shape index: {}]
  %s2 = inlined_call_operand.vmem [shape: f32[2,1,32], index: 2, kind: input, shape index: {}]
  %s3 = inlined_call_operand.vmem [shape: f32[2,32,96], index: 3, kind: input, shape index: {}]
  %s4 = inlined_call_operand.vmem [shape: f32[2,1,96], index: 4, kind: input, shape index: {}]
  %s5 = inlined_call_operand.vmem [shape: f32[2,32,32], index: 5, kind: input, shape index: {}]
  %s6 = inlined_call_operand.vmem [shape: f32[2,1,32], index: 6, kind: input, shape index: {}]
  %s7 = inlined_call_operand.vmem [shape: f32[2,1,32], index: 7, kind: input, shape index: {}]
  %s8 = inlined_call_operand.vmem [shape: f32[2,1,32], index: 8, kind: input, shape index: {}]
  %s9 = inlined_call_operand.vmem [shape: f32[2,32,128], index: 9, kind: input, shape index: {}]
  %s10 = inlined_call_operand.vmem [shape: f32[2,1,128], index: 10, kind: input, shape index: {}]
  %s11 = inlined_call_operand.vmem [shape: f32[2,128,32], index: 11, kind: input, shape index: {}]
  %s12 = inlined_call_operand.vmem [shape: f32[2,1,32], index: 12, kind: input, shape index: {}]
  %s13 = inlined_call_operand.vmem [shape: f32[1,32], index: 13, kind: input, shape index: {}]
  %s14 = inlined_call_operand.vmem [shape: f32[1,32], index: 14, kind: input, shape index: {}]
  %s15 = inlined_call_operand.hbm [shape: f32[16,32], index: 15, kind: output, shape index: {}]
  %s16 = sld [smem:[#allocation0]]
  $region105: #{tpu_custom_call.1} parent=0
    _
  %s18 = ssub.s32 1, %s16
  %s19 = scalar_select 0, %s18, %s16
  $region1: #{tpu_custom_call.1} parent=0
    #allocation4 [shape = 'u8[8192]{0}', space=vmem, size = 0x2000, scoped, tag = 'output window, operand 0']
    #allocation5 [shape = 's32[2]{0}', space=sflag, size = 0x8, scoped, tag = 'scoped memory for tpu_custom_call.1']
    %20 = vsyncpa [#allocation5], 0
    %s21 = scalar_lea.sflag [#allocation5], 1
    %22 = vsyncpa %s21, 0
    loop: start=0, step=1, limit=6
    $region2: #{tpu_custom_call.1} parent=1 // loop_pre_header
      _
    $region3: #{tpu_custom_call.1} parent=1 // loop_header
      %s24 = sphi 0, %s28
      %p25 = scmp.ge.s32.totalorder %s24, 6
      %s31 = sphi 0, %s43
      %s32 = sphi 0, %s39
      %s33 = sphi 0, %s31
      %s34 = sphi 0, %s32
      %s35 = sphi 0, %s33
      %s36 = sphi 0, %s34
      %s46 = sphi 0, %s48
      %s49 = sphi 0, %s46
      %s50 = sphi 0, %s49
      %s66 = sphi 0, %s50
      %s72 = sphi 0, %s74
      %s75 = sphi 0, %s72
      %s76 = sphi 0, %s75
      %s92 = sphi 0, %s76
      %s98 = sphi 0, %s100
      %s101 = sphi 0, %s98
      %s102 = sphi 0, %s101
      %s118 = sphi 0, %s102
      %s124 = sphi 0, %s126
      %s127 = sphi 0, %s124
      %s128 = sphi 0, %s127
      %s144 = sphi 0, %s128
      %s150 = sphi 0, %s152
      %s153 = sphi 0, %s150
      %s154 = sphi 0, %s153
      %s170 = sphi 0, %s154
      %s176 = sphi 0, %s178
      %s179 = sphi 0, %s176
      %s180 = sphi 0, %s179
      %s196 = sphi 0, %s180
      %s202 = sphi 0, %s204
      %s205 = sphi 0, %s202
      %s206 = sphi 0, %s205
      %s222 = sphi 0, %s206
      %s228 = sphi 0, %s230
      %s231 = sphi 0, %s228
      %s232 = sphi 0, %s231
      %s248 = sphi 0, %s232
      %s254 = sphi 0, %s256
      %s257 = sphi 0, %s254
      %s258 = sphi 0, %s257
      %s274 = sphi 0, %s258
      %s280 = sphi 0, %s282
      %s283 = sphi 0, %s280
      %s284 = sphi 0, %s283
      %s300 = sphi 0, %s284
      %s306 = sphi 0, %s308
      %s309 = sphi 0, %s306
      %s310 = sphi 0, %s309
      %s326 = sphi 0, %s310
      %s332 = sphi 0, %s334
      %s335 = sphi 0, %s332
      %s336 = sphi 0, %s335
      %s352 = sphi 0, %s336
      %s358 = sphi 0, %s360
      %s361 = sphi 0, %s358
      %s362 = sphi 0, %s361
      %s378 = sphi 0, %s362
      %s382 = sphi 0, %s382
      %s384 = sphi 0, %s382
      %s385 = sphi 0, %s384
      %s399 = sphi 0, %s385
      %s403 = sphi 0, %s403
      %s405 = sphi 0, %s403
      %s406 = sphi 0, %s405
      %s420 = sphi 0, %s406
      %s426 = sphi 0, %s428
      %s429 = sphi 0, %s426
      %s430 = sphi 0, %s429
      %s446 = sphi 0, %s430
    $region4: #{tpu_custom_call.1} parent=1 // loop_header_branch
      %27 = sbr.rel (%p25) target = $region8
    $region5: #{tpu_custom_call.1} parent=1 // loop_body
      %s29 = ssub.s32 %s24, 1
      %s30 = ssub.s32 %s24, 2
      %s37 = sadd.s32 1, %s32
      %p38 = scmp.ge.s32.totalorder %s37, 2
      %s39 = scalar_select %p38, 0, %s37
      %s40 = sadd.s32 1, %s31
      %s41 = scalar_select %p38, %s40, %s31
      %p42 = scmp.ge.s32.totalorder %s41, 2
      %s43 = scalar_select %p42, 0, %s41
      %s44 = ssub.s32 %s31, %s43
      %p45 = scmp.eq.s32.totalorder %s44, 0
      %s47 = sadd.s32 %s46, 1
      %s48 = scalar_select %p45, %s46, %s47
      %p51 = pneg %p45
      %p52 = scmp.eq.s32.totalorder %s24, 3
      %p53 = por %p51, %p52
      %p54 = scmp.ne.s32.totalorder %s46, %s49
      %p55 = scmp.eq.s32.totalorder %s24, 0
      %p56 = por %p54, %p55
      %p57 = scmp.ne.s32.totalorder %s46, %s49
      %p58 = scmp.eq.s32.totalorder %s29, 3
      %p59 = por %p57, %p58
      %p60 = scmp.ne.s32.totalorder %s49, %s50
      %p61 = scmp.eq.s32.totalorder %s29, 0
      %p62 = por %p60, %p61
      %p63 = scmp.ne.s32.totalorder %s49, %s50
      %p64 = scmp.eq.s32.totalorder %s30, 3
      %p65 = por %p63, %p64
      %p67 = scmp.ne.s32.totalorder %s50, %s66
      %p68 = scmp.eq.s32.totalorder %s30, 0
      %p69 = por %p67, %p68
      %s70 = ssub.s32 %s32, %s39
      %p71 = scmp.eq.s32.totalorder %s70, 0
      %s73 = sadd.s32 %s72, 1
      %s74 = scalar_select %p71, %s72, %s73
      %p77 = pneg %p71
      %p78 = scmp.eq.s32.totalorder %s24, 3
      %p79 = por %p77, %p78
      %p80 = scmp.ne.s32.totalorder %s72, %s75
      %p81 = scmp.eq.s32.totalorder %s24, 0
      %p82 = por %p80, %p81
      %p83 = scmp.ne.s32.totalorder %s72, %s75
      %p84 = scmp.eq.s32.totalorder %s29, 3
      %p85 = por %p83, %p84
      %p86 = scmp.ne.s32.totalorder %s75, %s76
      %p87 = scmp.eq.s32.totalorder %s29, 0
      %p88 = por %p86, %p87
      %p89 = scmp.ne.s32.totalorder %s75, %s76
      %p90 = scmp.eq.s32.totalorder %s30, 3
      %p91 = por %p89, %p90
      %p93 = scmp.ne.s32.totalorder %s76, %s92
      %p94 = scmp.eq.s32.totalorder %s30, 0
      %p95 = por %p93, %p94
      %s96 = ssub.s32 %s32, %s39
      %p97 = scmp.eq.s32.totalorder %s96, 0
      %s99 = sadd.s32 %s98, 1
      %s100 = scalar_select %p97, %s98, %s99
      %p103 = pneg %p97
      %p104 = scmp.eq.s32.totalorder %s24, 3
      %p105 = por %p103, %p104
      %p106 = scmp.ne.s32.totalorder %s98, %s101
      %p107 = scmp.eq.s32.totalorder %s24, 0
      %p108 = por %p106, %p107
      %p109 = scmp.ne.s32.totalorder %s98, %s101
      %p110 = scmp.eq.s32.totalorder %s29, 3
      %p111 = por %p109, %p110
      %p112 = scmp.ne.s32.totalorder %s101, %s102
      %p113 = scmp.eq.s32.totalorder %s29, 0
      %p114 = por %p112, %p113
      %p115 = scmp.ne.s32.totalorder %s101, %s102
      %p116 = scmp.eq.s32.totalorder %s30, 3
      %p117 = por %p115, %p116
      %p119 = scmp.ne.s32.totalorder %s102, %s118
      %p120 = scmp.eq.s32.totalorder %s30, 0
      %p121 = por %p119, %p120
      %s122 = ssub.s32 %s32, %s39
      %p123 = scmp.eq.s32.totalorder %s122, 0
      %s125 = sadd.s32 %s124, 1
      %s126 = scalar_select %p123, %s124, %s125
      %p129 = pneg %p123
      %p130 = scmp.eq.s32.totalorder %s24, 3
      %p131 = por %p129, %p130
      %p132 = scmp.ne.s32.totalorder %s124, %s127
      %p133 = scmp.eq.s32.totalorder %s24, 0
      %p134 = por %p132, %p133
      %p135 = scmp.ne.s32.totalorder %s124, %s127
      %p136 = scmp.eq.s32.totalorder %s29, 3
      %p137 = por %p135, %p136
      %p138 = scmp.ne.s32.totalorder %s127, %s128
      %p139 = scmp.eq.s32.totalorder %s29, 0
      %p140 = por %p138, %p139
      %p141 = scmp.ne.s32.totalorder %s127, %s128
      %p142 = scmp.eq.s32.totalorder %s30, 3
      %p143 = por %p141, %p142
      %p145 = scmp.ne.s32.totalorder %s128, %s144
      %p146 = scmp.eq.s32.totalorder %s30, 0
      %p147 = por %p145, %p146
      %s148 = ssub.s32 %s32, %s39
      %p149 = scmp.eq.s32.totalorder %s148, 0
      %s151 = sadd.s32 %s150, 1
      %s152 = scalar_select %p149, %s150, %s151
      %p155 = pneg %p149
      %p156 = scmp.eq.s32.totalorder %s24, 3
      %p157 = por %p155, %p156
      %p158 = scmp.ne.s32.totalorder %s150, %s153
      %p159 = scmp.eq.s32.totalorder %s24, 0
      %p160 = por %p158, %p159
      %p161 = scmp.ne.s32.totalorder %s150, %s153
      %p162 = scmp.eq.s32.totalorder %s29, 3
      %p163 = por %p161, %p162
      %p164 = scmp.ne.s32.totalorder %s153, %s154
      %p165 = scmp.eq.s32.totalorder %s29, 0
      %p166 = por %p164, %p165
      %p167 = scmp.ne.s32.totalorder %s153, %s154
      %p168 = scmp.eq.s32.totalorder %s30, 3
      %p169 = por %p167, %p168
      %p171 = scmp.ne.s32.totalorder %s154, %s170
      %p172 = scmp.eq.s32.totalorder %s30, 0
      %p173 = por %p171, %p172
      %s174 = ssub.s32 %s32, %s39
      %p175 = scmp.eq.s32.totalorder %s174, 0
      %s177 = sadd.s32 %s176, 1
      %s178 = scalar_select %p175, %s176, %s177
      %p181 = pneg %p175
      %p182 = scmp.eq.s32.totalorder %s24, 3
      %p183 = por %p181, %p182
      %p184 = scmp.ne.s32.totalorder %s176, %s179
      %p185 = scmp.eq.s32.totalorder %s24, 0
      %p186 = por %p184, %p185
      %p187 = scmp.ne.s32.totalorder %s176, %s179
      %p188 = scmp.eq.s32.totalorder %s29, 3
      %p189 = por %p187, %p188
      %p190 = scmp.ne.s32.totalorder %s179, %s180
      %p191 = scmp.eq.s32.totalorder %s29, 0
      %p192 = por %p190, %p191
      %p193 = scmp.ne.s32.totalorder %s179, %s180
      %p194 = scmp.eq.s32.totalorder %s30, 3
      %p195 = por %p193, %p194
      %p197 = scmp.ne.s32.totalorder %s180, %s196
      %p198 = scmp.eq.s32.totalorder %s30, 0
      %p199 = por %p197, %p198
      %s200 = ssub.s32 %s32, %s39
      %p201 = scmp.eq.s32.totalorder %s200, 0
      %s203 = sadd.s32 %s202, 1
      %s204 = scalar_select %p201, %s202, %s203
      %p207 = pneg %p201
      %p208 = scmp.eq.s32.totalorder %s24, 3
      %p209 = por %p207, %p208
      %p210 = scmp.ne.s32.totalorder %s202, %s205
      %p211 = scmp.eq.s32.totalorder %s24, 0
      %p212 = por %p210, %p211
      %p213 = scmp.ne.s32.totalorder %s202, %s205
      %p214 = scmp.eq.s32.totalorder %s29, 3
      %p215 = por %p213, %p214
      %p216 = scmp.ne.s32.totalorder %s205, %s206
      %p217 = scmp.eq.s32.totalorder %s29, 0
      %p218 = por %p216, %p217
      %p219 = scmp.ne.s32.totalorder %s205, %s206
      %p220 = scmp.eq.s32.totalorder %s30, 3
      %p221 = por %p219, %p220
      %p223 = scmp.ne.s32.totalorder %s206, %s222
      %p224 = scmp.eq.s32.totalorder %s30, 0
      %p225 = por %p223, %p224
      %s226 = ssub.s32 %s32, %s39
      %p227 = scmp.eq.s32.totalorder %s226, 0
      %s229 = sadd.s32 %s228, 1
      %s230 = scalar_select %p227, %s228, %s229
      %p233 = pneg %p227
      %p234 = scmp.eq.s32.totalorder %s24, 3
      %p235 = por %p233, %p234
      %p236 = scmp.ne.s32.totalorder %s228, %s231
      %p237 = scmp.eq.s32.totalorder %s24, 0
      %p238 = por %p236, %p237
      %p239 = scmp.ne.s32.totalorder %s228, %s231
      %p240 = scmp.eq.s32.totalorder %s29, 3
      %p241 = por %p239, %p240
      %p242 = scmp.ne.s32.totalorder %s231, %s232
      %p243 = scmp.eq.s32.totalorder %s29, 0
      %p244 = por %p242, %p243
      %p245 = scmp.ne.s32.totalorder %s231, %s232
      %p246 = scmp.eq.s32.totalorder %s30, 3
      %p247 = por %p245, %p246
      %p249 = scmp.ne.s32.totalorder %s232, %s248
      %p250 = scmp.eq.s32.totalorder %s30, 0
      %p251 = por %p249, %p250
      %s252 = ssub.s32 %s32, %s39
      %p253 = scmp.eq.s32.totalorder %s252, 0
      %s255 = sadd.s32 %s254, 1
      %s256 = scalar_select %p253, %s254, %s255
      %p259 = pneg %p253
      %p260 = scmp.eq.s32.totalorder %s24, 3
      %p261 = por %p259, %p260
      %p262 = scmp.ne.s32.totalorder %s254, %s257
      %p263 = scmp.eq.s32.totalorder %s24, 0
      %p264 = por %p262, %p263
      %p265 = scmp.ne.s32.totalorder %s254, %s257
      %p266 = scmp.eq.s32.totalorder %s29, 3
      %p267 = por %p265, %p266
      %p268 = scmp.ne.s32.totalorder %s257, %s258
      %p269 = scmp.eq.s32.totalorder %s29, 0
      %p270 = por %p268, %p269
      %p271 = scmp.ne.s32.totalorder %s257, %s258
      %p272 = scmp.eq.s32.totalorder %s30, 3
      %p273 = por %p271, %p272
      %p275 = scmp.ne.s32.totalorder %s258, %s274
      %p276 = scmp.eq.s32.totalorder %s30, 0
      %p277 = por %p275, %p276
      %s278 = ssub.s32 %s32, %s39
      %p279 = scmp.eq.s32.totalorder %s278, 0
      %s281 = sadd.s32 %s280, 1
      %s282 = scalar_select %p279, %s280, %s281
      %p285 = pneg %p279
      %p286 = scmp.eq.s32.totalorder %s24, 3
      %p287 = por %p285, %p286
      %p288 = scmp.ne.s32.totalorder %s280, %s283
      %p289 = scmp.eq.s32.totalorder %s24, 0
      %p290 = por %p288, %p289
      %p291 = scmp.ne.s32.totalorder %s280, %s283
      %p292 = scmp.eq.s32.totalorder %s29, 3
      %p293 = por %p291, %p292
      %p294 = scmp.ne.s32.totalorder %s283, %s284
      %p295 = scmp.eq.s32.totalorder %s29, 0
      %p296 = por %p294, %p295
      %p297 = scmp.ne.s32.totalorder %s283, %s284
      %p298 = scmp.eq.s32.totalorder %s30, 3
      %p299 = por %p297, %p298
      %p301 = scmp.ne.s32.totalorder %s284, %s300
      %p302 = scmp.eq.s32.totalorder %s30, 0
      %p303 = por %p301, %p302
      %s304 = ssub.s32 %s32, %s39
      %p305 = scmp.eq.s32.totalorder %s304, 0
      %s307 = sadd.s32 %s306, 1
      %s308 = scalar_select %p305, %s306, %s307
      %p311 = pneg %p305
      %p312 = scmp.eq.s32.totalorder %s24, 3
      %p313 = por %p311, %p312
      %p314 = scmp.ne.s32.totalorder %s306, %s309
      %p315 = scmp.eq.s32.totalorder %s24, 0
      %p316 = por %p314, %p315
      %p317 = scmp.ne.s32.totalorder %s306, %s309
      %p318 = scmp.eq.s32.totalorder %s29, 3
      %p319 = por %p317, %p318
      %p320 = scmp.ne.s32.totalorder %s309, %s310
      %p321 = scmp.eq.s32.totalorder %s29, 0
      %p322 = por %p320, %p321
      %p323 = scmp.ne.s32.totalorder %s309, %s310
      %p324 = scmp.eq.s32.totalorder %s30, 3
      %p325 = por %p323, %p324
      %p327 = scmp.ne.s32.totalorder %s310, %s326
      %p328 = scmp.eq.s32.totalorder %s30, 0
      %p329 = por %p327, %p328
      %s330 = ssub.s32 %s32, %s39
      %p331 = scmp.eq.s32.totalorder %s330, 0
      %s333 = sadd.s32 %s332, 1
      %s334 = scalar_select %p331, %s332, %s333
      %p337 = pneg %p331
      %p338 = scmp.eq.s32.totalorder %s24, 3
      %p339 = por %p337, %p338
      %p340 = scmp.ne.s32.totalorder %s332, %s335
      %p341 = scmp.eq.s32.totalorder %s24, 0
      %p342 = por %p340, %p341
      %p343 = scmp.ne.s32.totalorder %s332, %s335
      %p344 = scmp.eq.s32.totalorder %s29, 3
      %p345 = por %p343, %p344
      %p346 = scmp.ne.s32.totalorder %s335, %s336
      %p347 = scmp.eq.s32.totalorder %s29, 0
      %p348 = por %p346, %p347
      %p349 = scmp.ne.s32.totalorder %s335, %s336
      %p350 = scmp.eq.s32.totalorder %s30, 3
      %p351 = por %p349, %p350
      %p353 = scmp.ne.s32.totalorder %s336, %s352
      %p354 = scmp.eq.s32.totalorder %s30, 0
      %p355 = por %p353, %p354
      %s356 = ssub.s32 %s32, %s39
      %p357 = scmp.eq.s32.totalorder %s356, 0
      %s359 = sadd.s32 %s358, 1
      %s360 = scalar_select %p357, %s358, %s359
      %p363 = pneg %p357
      %p364 = scmp.eq.s32.totalorder %s24, 3
      %p365 = por %p363, %p364
      %p366 = scmp.ne.s32.totalorder %s358, %s361
      %p367 = scmp.eq.s32.totalorder %s24, 0
      %p368 = por %p366, %p367
      %p369 = scmp.ne.s32.totalorder %s358, %s361
      %p370 = scmp.eq.s32.totalorder %s29, 3
      %p371 = por %p369, %p370
      %p372 = scmp.ne.s32.totalorder %s361, %s362
      %p373 = scmp.eq.s32.totalorder %s29, 0
      %p374 = por %p372, %p373
      %p375 = scmp.ne.s32.totalorder %s361, %s362
      %p376 = scmp.eq.s32.totalorder %s30, 3
      %p377 = por %p375, %p376
      %p379 = scmp.ne.s32.totalorder %s362, %s378
      %p380 = scmp.eq.s32.totalorder %s30, 0
      %p381 = por %p379, %p380
      %s383 = sadd.s32 %s382, 1
      %p386 = scmp.eq.s32.totalorder %s24, 3
      %p387 = scmp.ne.s32.totalorder %s382, %s384
      %p388 = scmp.eq.s32.totalorder %s24, 0
      %p389 = por %p387, %p388
      %p390 = scmp.ne.s32.totalorder %s382, %s384
      %p391 = scmp.eq.s32.totalorder %s29, 3
      %p392 = por %p390, %p391
      %p393 = scmp.ne.s32.totalorder %s384, %s385
      %p394 = scmp.eq.s32.totalorder %s29, 0
      %p395 = por %p393, %p394
      %p396 = scmp.ne.s32.totalorder %s384, %s385
      %p397 = scmp.eq.s32.totalorder %s30, 3
      %p398 = por %p396, %p397
      %p400 = scmp.ne.s32.totalorder %s385, %s399
      %p401 = scmp.eq.s32.totalorder %s30, 0
      %p402 = por %p400, %p401
      %s404 = sadd.s32 %s403, 1
      %p407 = scmp.eq.s32.totalorder %s24, 3
      %p408 = scmp.ne.s32.totalorder %s403, %s405
      %p409 = scmp.eq.s32.totalorder %s24, 0
      %p410 = por %p408, %p409
      %p411 = scmp.ne.s32.totalorder %s403, %s405
      %p412 = scmp.eq.s32.totalorder %s29, 3
      %p413 = por %p411, %p412
      %p414 = scmp.ne.s32.totalorder %s405, %s406
      %p415 = scmp.eq.s32.totalorder %s29, 0
      %p416 = por %p414, %p415
      %p417 = scmp.ne.s32.totalorder %s405, %s406
      %p418 = scmp.eq.s32.totalorder %s30, 3
      %p419 = por %p417, %p418
      %p421 = scmp.ne.s32.totalorder %s406, %s420
      %p422 = scmp.eq.s32.totalorder %s30, 0
      %p423 = por %p421, %p422
      %s424 = ssub.s32 %s31, %s43
      %p425 = scmp.eq.s32.totalorder %s424, 0
      %s427 = sadd.s32 %s426, 1
      %s428 = scalar_select %p425, %s426, %s427
      %p431 = pneg %p425
      %p432 = scmp.eq.s32.totalorder %s24, 3
      %p433 = por %p431, %p432
      %p434 = scmp.ne.s32.totalorder %s426, %s429
      %p435 = scmp.eq.s32.totalorder %s24, 0
      %p436 = por %p434, %p435
      %p437 = scmp.ne.s32.totalorder %s426, %s429
      %p438 = scmp.eq.s32.totalorder %s29, 3
      %p439 = por %p437, %p438
      %p440 = scmp.ne.s32.totalorder %s429, %s430
      %p441 = scmp.eq.s32.totalorder %s29, 0
      %p442 = por %p440, %p441
      %p443 = scmp.ne.s32.totalorder %s429, %s430
      %p444 = scmp.eq.s32.totalorder %s30, 3
      %p445 = por %p443, %p444
      %p447 = scmp.ne.s32.totalorder %s430, %s446
      %p448 = scmp.eq.s32.totalorder %s30, 0
      %p449 = por %p447, %p448
      %p450 = scmp.le.s32.totalorder 1, %s24
      %p451 = scmp.lt.s32.totalorder %s24, 5
      %p452 = pnand %p450, %p451
      %p453 = pneg %p452
      // Predicated region
      $region9: #{tpu_custom_call.1} parent=5 // pred_check
        _
      $region10: #{tpu_custom_call.1} parent=5 // pred_check_branch
        %455 = sbr.rel (%p452) target = $region12
      $region11: #{tpu_custom_call.1} parent=5 // pred_region
        %s456 = ssub.s32 %s24, 1
        // Predicated region
        $region13: #{tpu_custom_call.1} parent=11 // pred_check
          %p457 = pneg %p395
        $region14: #{tpu_custom_call.1} parent=11 // pred_check_branch
          %459 = sbr.rel (%p457) target = $region16
        $region15: #{tpu_custom_call.1} parent=11 // pred_region
          _
        $region16: #{tpu_custom_call.1} parent=11 // pred_fallthru
          _
        // Predicated region
        $region17: #{tpu_custom_call.1} parent=11 // pred_check
          %p460 = pneg %p416
        $region18: #{tpu_custom_call.1} parent=11 // pred_check_branch
          %462 = sbr.rel (%p460) target = $region20
        $region19: #{tpu_custom_call.1} parent=11 // pred_region
          _
        $region20: #{tpu_custom_call.1} parent=11 // pred_fallthru
          _
      $region12: #{tpu_custom_call.1} parent=5 // pred_fallthru
        _
      %p463 = scmp.lt.s32.totalorder %s24, 4
      // Predicated region
      $region21: #{tpu_custom_call.1} parent=5 // pred_check
        %p464 = pneg %p463
      $region22: #{tpu_custom_call.1} parent=5 // pred_check_branch
        %466 = sbr.rel (%p464) target = $region24
      $region23: #{tpu_custom_call.1} parent=5 // pred_region
        // Predicated region
        $region25: #{tpu_custom_call.1} parent=23 // pred_check
          %p467 = pneg %p56
        $region26: #{tpu_custom_call.1} parent=23 // pred_check_branch
          %469 = sbr.rel (%p467) target = $region28
        $region27: #{tpu_custom_call.1} parent=23 // pred_region
          %p470 = scmp.lt.s32.totalorder %s31, 1
          %s471 = scalar_select %p470, %s31, 1
          %s472 = smul.addr %s471, 8
          %s473 = scalar_lea.vmem %s0, %s472
        $region28: #{tpu_custom_call.1} parent=23 // pred_fallthru
          _
        // Predicated region
        $region29: #{tpu_custom_call.1} parent=23 // pred_check
          %p474 = pneg %p82
        $region30: #{tpu_custom_call.1} parent=23 // pred_check_branch
          %476 = sbr.rel (%p474) target = $region32
        $region31: #{tpu_custom_call.1} parent=23 // pred_region
          %p477 = scmp.lt.s32.totalorder %s32, 1
          %s478 = scalar_select %p477, %s32, 1
          %s479 = scalar_lea.vmem %s1, %s478
        $region32: #{tpu_custom_call.1} parent=23 // pred_fallthru
          _
        // Predicated region
        $region33: #{tpu_custom_call.1} parent=23 // pred_check
          %p480 = pneg %p108
        $region34: #{tpu_custom_call.1} parent=23 // pred_check_branch
          %482 = sbr.rel (%p480) target = $region36
        $region35: #{tpu_custom_call.1} parent=23 // pred_region
          %p483 = scmp.lt.s32.totalorder %s32, 1
          %s484 = scalar_select %p483, %s32, 1
          %s485 = scalar_lea.vmem %s2, %s484
        $region36: #{tpu_custom_call.1} parent=23 // pred_fallthru
          _
        // Predicated region
        $region37: #{tpu_custom_call.1} parent=23 // pred_check
          %p486 = pneg %p134
        $region38: #{tpu_custom_call.1} parent=23 // pred_check_branch
          %488 = sbr.rel (%p486) target = $region40
        $region39: #{tpu_custom_call.1} parent=23 // pred_region
          %p489 = scmp.lt.s32.totalorder %s32, 1
          %s490 = scalar_select %p489, %s32, 1
          %s491 = smul.addr %s490, 4
          %s492 = smul.addr %s491, 8
          %s493 = scalar_lea.vmem %s3, %s492
        $region40: #{tpu_custom_call.1} parent=23 // pred_fallthru
          _
        // Predicated region
        $region41: #{tpu_custom_call.1} parent=23 // pred_check
          %p494 = pneg %p160
        $region42: #{tpu_custom_call.1} parent=23 // pred_check_branch
          %496 = sbr.rel (%p494) target = $region44
        $region43: #{tpu_custom_call.1} parent=23 // pred_region
          %p497 = scmp.lt.s32.totalorder %s32, 1
          %s498 = scalar_select %p497, %s32, 1
          %s499 = scalar_lea.vmem %s4, %s498
        $region44: #{tpu_custom_call.1} parent=23 // pred_fallthru
          _
        // Predicated region
        $region45: #{tpu_custom_call.1} parent=23 // pred_check
          %p500 = pneg %p186
        $region46: #{tpu_custom_call.1} parent=23 // pred_check_branch
          %502 = sbr.rel (%p500) target = $region48
        $region47: #{tpu_custom_call.1} parent=23 // pred_region
          %p503 = scmp.lt.s32.totalorder %s32, 1
          %s504 = scalar_select %p503, %s32, 1
          %s505 = smul.addr %s504, 4
          %s506 = smul.addr %s505, 8
          %s507 = scalar_lea.vmem %s5, %s506
        $region48: #{tpu_custom_call.1} parent=23 // pred_fallthru
          _
        // Predicated region
        $region49: #{tpu_custom_call.1} parent=23 // pred_check
          %p508 = pneg %p212
        $region50: #{tpu_custom_call.1} parent=23 // pred_check_branch
          %510 = sbr.rel (%p508) target = $region52
        $region51: #{tpu_custom_call.1} parent=23 // pred_region
          %p511 = scmp.lt.s32.totalorder %s32, 1
          %s512 = scalar_select %p511, %s32, 1
          %s513 = scalar_lea.vmem %s6, %s512
        $region52: #{tpu_custom_call.1} parent=23 // pred_fallthru
          _
        // Predicated region
        $region53: #{tpu_custom_call.1} parent=23 // pred_check
          %p514 = pneg %p238
        $region54: #{tpu_custom_call.1} parent=23 // pred_check_branch
          %516 = sbr.rel (%p514) target = $region56
        $region55: #{tpu_custom_call.1} parent=23 // pred_region
          %p517 = scmp.lt.s32.totalorder %s32, 1
          %s518 = scalar_select %p517, %s32, 1
          %s519 = scalar_lea.vmem %s7, %s518
        $region56: #{tpu_custom_call.1} parent=23 // pred_fallthru
          _
        // Predicated region
        $region57: #{tpu_custom_call.1} parent=23 // pred_check
          %p520 = pneg %p264
        $region58: #{tpu_custom_call.1} parent=23 // pred_check_branch
          %522 = sbr.rel (%p520) target = $region60
        $region59: #{tpu_custom_call.1} parent=23 // pred_region
          %p523 = scmp.lt.s32.totalorder %s32, 1
          %s524 = scalar_select %p523, %s32, 1
          %s525 = scalar_lea.vmem %s8, %s524
        $region60: #{tpu_custom_call.1} parent=23 // pred_fallthru
          _
        // Predicated region
        $region61: #{tpu_custom_call.1} parent=23 // pred_check
          %p526 = pneg %p290
        $region62: #{tpu_custom_call.1} parent=23 // pred_check_branch
          %528 = sbr.rel (%p526) target = $region64
        $region63: #{tpu_custom_call.1} parent=23 // pred_region
          %p529 = scmp.lt.s32.totalorder %s32, 1
          %s530 = scalar_select %p529, %s32, 1
          %s531 = smul.addr %s530, 4
          %s532 = smul.addr %s531, 8
          %s533 = scalar_lea.vmem %s9, %s532
        $region64: #{tpu_custom_call.1} parent=23 // pred_fallthru
          _
        // Predicated region
        $region65: #{tpu_custom_call.1} parent=23 // pred_check
          %p534 = pneg %p316
        $region66: #{tpu_custom_call.1} parent=23 // pred_check_branch
          %536 = sbr.rel (%p534) target = $region68
        $region67: #{tpu_custom_call.1} parent=23 // pred_region
          %p537 = scmp.lt.s32.totalorder %s32, 1
          %s538 = scalar_select %p537, %s32, 1
          %s539 = scalar_lea.vmem %s10, %s538
        $region68: #{tpu_custom_call.1} parent=23 // pred_fallthru
          _
        // Predicated region
        $region69: #{tpu_custom_call.1} parent=23 // pred_check
          %p540 = pneg %p342
        $region70: #{tpu_custom_call.1} parent=23 // pred_check_branch
          %542 = sbr.rel (%p540) target = $region72
        $region71: #{tpu_custom_call.1} parent=23 // pred_region
          %p543 = scmp.lt.s32.totalorder %s32, 1
          %s544 = scalar_select %p543, %s32, 1
          %s545 = smul.addr %s544, 16
          %s546 = smul.addr %s545, 8
          %s547 = scalar_lea.vmem %s11, %s546
        $region72: #{tpu_custom_call.1} parent=23 // pred_fallthru
          _
        // Predicated region
        $region73: #{tpu_custom_call.1} parent=23 // pred_check
          %p548 = pneg %p368
        $region74: #{tpu_custom_call.1} parent=23 // pred_check_branch
          %550 = sbr.rel (%p548) target = $region76
        $region75: #{tpu_custom_call.1} parent=23 // pred_region
          %p551 = scmp.lt.s32.totalorder %s32, 1
          %s552 = scalar_select %p551, %s32, 1
          %s553 = scalar_lea.vmem %s12, %s552
        $region76: #{tpu_custom_call.1} parent=23 // pred_fallthru
          _
      $region24: #{tpu_custom_call.1} parent=5 // pred_fallthru
        _
      %p554 = scmp.le.s32.totalorder 1, %s24
      %p555 = scmp.lt.s32.totalorder %s24, 5
      %p556 = pnand %p554, %p555
      %p557 = pneg %p556
      // Predicated region
      $region77: #{tpu_custom_call.1} parent=5 // pred_check
        _
      $region78: #{tpu_custom_call.1} parent=5 // pred_check_branch
        %559 = sbr.rel (%p556) target = $region80
      $region79: #{tpu_custom_call.1} parent=5 // pred_region
        %s560 = ssub.s32 %s24, 1
        %p561 = scmp.lt.s32.totalorder %s33, 1
        %s562 = scalar_select %p561, %s33, 1
        %s563 = smul.addr %s562, 8
        %s564 = scalar_lea.vmem %s0, %s563
        %p565 = pneg %p62
        %p566 = pneg %p59
        %p567 = scmp.lt.s32.totalorder %s34, 1
        %s568 = scalar_select %p567, %s34, 1
        %s569 = scalar_lea.vmem %s1, %s568
        %p570 = pneg %p88
        %p571 = pneg %p85
        %p572 = scmp.lt.s32.totalorder %s34, 1
        %s573 = scalar_select %p572, %s34, 1
        %s574 = scalar_lea.vmem %s2, %s573
        %p575 = pneg %p114
        %p576 = pneg %p111
        %p577 = scmp.lt.s32.totalorder %s34, 1
        %s578 = scalar_select %p577, %s34, 1
        %s579 = smul.addr %s578, 4
        %s580 = smul.addr %s579, 8
        %s581 = scalar_lea.vmem %s3, %s580
        %p582 = pneg %p140
        %p583 = pneg %p137
        %p584 = scmp.lt.s32.totalorder %s34, 1
        %s585 = scalar_select %p584, %s34, 1
        %s586 = scalar_lea.vmem %s4, %s585
        %p587 = pneg %p166
        %p588 = pneg %p163
        %p589 = scmp.lt.s32.totalorder %s34, 1
        %s590 = scalar_select %p589, %s34, 1
        %s591 = smul.addr %s590, 4
        %s592 = smul.addr %s591, 8
        %s593 = scalar_lea.vmem %s5, %s592
        %p594 = pneg %p192
        %p595 = pneg %p189
        %p596 = scmp.lt.s32.totalorder %s34, 1
        %s597 = scalar_select %p596, %s34, 1
        %s598 = scalar_lea.vmem %s6, %s597
        %p599 = pneg %p218
        %p600 = pneg %p215
        %p601 = scmp.lt.s32.totalorder %s34, 1
        %s602 = scalar_select %p601, %s34, 1
        %s603 = scalar_lea.vmem %s7, %s602
        %p604 = pneg %p244
        %p605 = pneg %p241
        %p606 = scmp.lt.s32.totalorder %s34, 1
        %s607 = scalar_select %p606, %s34, 1
        %s608 = scalar_lea.vmem %s8, %s607
        %p609 = pneg %p270
        %p610 = pneg %p267
        %p611 = scmp.lt.s32.totalorder %s34, 1
        %s612 = scalar_select %p611, %s34, 1
        %s613 = smul.addr %s612, 4
        %s614 = smul.addr %s613, 8
        %s615 = scalar_lea.vmem %s9, %s614
        %p616 = pneg %p296
        %p617 = pneg %p293
        %p618 = scmp.lt.s32.totalorder %s34, 1
        %s619 = scalar_select %p618, %s34, 1
        %s620 = scalar_lea.vmem %s10, %s619
        %p621 = pneg %p322
        %p622 = pneg %p319
        %p623 = scmp.lt.s32.totalorder %s34, 1
        %s624 = scalar_select %p623, %s34, 1
        %s625 = smul.addr %s624, 16
        %s626 = smul.addr %s625, 8
        %s627 = scalar_lea.vmem %s11, %s626
        %p628 = pneg %p348
        %p629 = pneg %p345
        %p630 = scmp.lt.s32.totalorder %s34, 1
        %s631 = scalar_select %p630, %s34, 1
        %s632 = scalar_lea.vmem %s12, %s631
        %p633 = pneg %p374
        %p634 = pneg %p371
        %p635 = pneg %p395
        %p636 = pneg %p392
        %p637 = pneg %p416
        %p638 = pneg %p413
        %p639 = pneg %p442
        %p640 = pneg %p439
        %s641 = sand.u32 %s429, 1
        %s642 = scalar_lea.sflag [#allocation5], %s641
        %s643 = sand.u32 %s429, 1
        %s644 = smul.addr %s643, 8
        %s645 = scalar_lea.vmem [#allocation4], %s644
        %p646 = scmp.lt.s32.totalorder %s33, 1
        %s647 = scalar_select %p646, %s33, 1
        %s648 = smul.addr %s647, 8
        %s649 = scalar_lea.vmem %s0, %s648
        %p650 = scmp.lt.s32.totalorder %s34, 1
        %s651 = scalar_select %p650, %s34, 1
        %s652 = scalar_lea.vmem %s1, %s651
        %p653 = scmp.lt.s32.totalorder %s34, 1
        %s654 = scalar_select %p653, %s34, 1
        %s655 = scalar_lea.vmem %s2, %s654
        %p656 = scmp.lt.s32.totalorder %s34, 1
        %s657 = scalar_select %p656, %s34, 1
        %s658 = smul.addr %s657, 4
        %s659 = smul.addr %s658, 8
        %s660 = scalar_lea.vmem %s3, %s659
        %p661 = scmp.lt.s32.totalorder %s34, 1
        %s662 = scalar_select %p661, %s34, 1
        %s663 = scalar_lea.vmem %s4, %s662
        %p664 = scmp.lt.s32.totalorder %s34, 1
        %s665 = scalar_select %p664, %s34, 1
        %s666 = smul.addr %s665, 4
        %s667 = smul.addr %s666, 8
        %s668 = scalar_lea.vmem %s5, %s667
        %p669 = scmp.lt.s32.totalorder %s34, 1
        %s670 = scalar_select %p669, %s34, 1
        %s671 = scalar_lea.vmem %s6, %s670
        %p672 = scmp.lt.s32.totalorder %s34, 1
        %s673 = scalar_select %p672, %s34, 1
        %s674 = scalar_lea.vmem %s7, %s673
        %p675 = scmp.lt.s32.totalorder %s34, 1
        %s676 = scalar_select %p675, %s34, 1
        %s677 = scalar_lea.vmem %s8, %s676
        %p678 = scmp.lt.s32.totalorder %s34, 1
        %s679 = scalar_select %p678, %s34, 1
        %s680 = smul.addr %s679, 4
        %s681 = smul.addr %s680, 8
        %s682 = scalar_lea.vmem %s9, %s681
        %p683 = scmp.lt.s32.totalorder %s34, 1
        %s684 = scalar_select %p683, %s34, 1
        %s685 = scalar_lea.vmem %s10, %s684
        %p686 = scmp.lt.s32.totalorder %s34, 1
        %s687 = scalar_select %p686, %s34, 1
        %s688 = smul.addr %s687, 16
        %s689 = smul.addr %s688, 8
        %s690 = scalar_lea.vmem %s11, %s689
        %p691 = scmp.lt.s32.totalorder %s34, 1
        %s692 = scalar_select %p691, %s34, 1
        %s693 = scalar_lea.vmem %s12, %s692
        %p694 = scmp.eq.s32.totalorder %s34, 0
        // Predicated region
        $region81: #{tpu_custom_call.1} parent=79 // pred_check
          %p695 = pneg %p694
        $region82: #{tpu_custom_call.1} parent=79 // pred_check_branch
          %697 = sbr.rel (%p695) target = $region84
        $region83: #{tpu_custom_call.1} parent=79 // pred_region
          %v698 = vld [vmem:[%s649] sm:$0xff]
          %vm699 = vcmask 261120
          %700 = vst.msk [vmem:[%s645] sm:$0xff] %vm699, %v698
        $region84: #{tpu_custom_call.1} parent=79 // pred_fallthru
          _
        %v701 = vld [vmem:[%s645] sm:$0xff]
        %v702 = vld [vmem:[%s652] sm:$0x1]
        %v703 = vld [vmem:[%s655] sm:$0x1]
        %vm704 = vcmask 261120
        %v705 = vsel %vm704, %v701, 0.0
        %706 = vadd.xlane.f32.xlu0 %v705
        %v707 = vpop.xlane.xlu0 %706
        %v708 = vrcp.pop 32.0
        %v709 = vmul.f32 32.0, %v708
        %v710 = vsub.f32 1.0, %v709
        %v711 = vmul.f32 %v708, %v710
        %v712 = vadd.f32 %v708, %v711
        %vm713 = vweird.f32 %v708
        %v714 = vsel %vm713, %v708, %v712
        %v715 = vmul.f32 %v707, %v714
        %v716 = vsub.f32 %v701, %v715
        %v717 = vmul.f32 %v716, %v716
        %v718 = vsel %vm704, %v717, 0.0
        %719 = vadd.xlane.f32.xlu0 %v718
        %v720 = vpop.xlane.xlu0 %719
        %v721 = vmul.f32 %v720, %v714
        %v722 = vadd.f32 %v721, 1e-05
        %v723 = vrsqrt.pop %v722
        %v724 = vmul.f32 %v723, %v722
        %v725 = vmul.f32 %v724, %v723
        %v726 = vmul.f32 0.5, %v725
        %v727 = vsub.f32 1.5, %v726
        %v728 = vmul.f32 %v723, %v727
        %vm729 = vweird.f32 %v722
        %vm730 = vweird.f32 %v723
        %vm731 = vmor %vm729, %vm730
        %v732 = vsel %vm731, %v723, %v728
        %v733 = vmul.f32 %v716, %v732
        %v735 = vperm.slane %v702, 0
        %v737 = vmul.f32 %v733, %v735
        %v739 = vperm.slane %v703, 0
        %v741 = vadd.f32 %v737, %v739
        %v742 = vld [vmem:[%s660] sm:$0xff]
        %v743 = vld [vmem:[%s660 + $0x8] sm:$0xff]
        %v744 = vld [vmem:[%s660 + $0x10] sm:$0xff]
        %v745 = vld [vmem:[%s660 + $0x18] sm:$0xff]
        %v746 = vld [vmem:[%s663] sm:$0x1]
        %v748 = vperm.slane %v746, 0
        %v751 = vsel %vm704, %v741, 0
        %753 = vmatpush.msra.mxu0 0.0
        %754 = vmatpush.msra.mxu0 0.0
        %755 = vmatpush.msra.mxu0 0.0
        %756 = vmatpush.msra.mxu0 0.0
        %757 = vmatpush.msra.mxu0 0.0
        %758 = vmatpush.msra.mxu0 0.0
        %759 = vmatpush.msra.mxu0 0.0
        %760 = vmatpush.msra.mxu0 0.0
        %761 = vmatpush.msra.mxu0 0.0
        %762 = vmatpush.msra.mxu0 0.0
        %763 = vmatpush.msra.mxu0 0.0
        %764 = vmatpush.msra.mxu0 0.0
        %765 = vmatpush.msra.mxu0 %v745
        %766 = vmatpush.msra.mxu0 %v744
        %767 = vmatpush.msra.mxu0 %v743
        %768 = vmatpush.msra.mxu0 %v742
        %769 = vmatmul.f32.gmra.mxu0 %v751
        %v770 = vpop.f32.mrf.mxu0
        %v771 = vadd.f32 %v748, %v770
        %772 = vdwg.mxu0
        %vm773 = vcmask 785408
        %774 = vst.msk [vmem:[#allocation2] sm:$0xff] %vm773, %v771
        %v775 = vld [vmem:[#allocation2] sm:$0xff]
        %v776 = vmul.f32 %v775, 0.35355338
        %778 = vrot.lane.b32.xlu0 %v775, 96
        %v779 = vpop.permute.xlu0 %778
        %vm780 = vcmask 64512
        %v782 = vsel %vm780, %v776, 0
        %v784 = vsel %vm780, %v779, 0
        %786 = vmatpush.xpose.msra.mxu0 0.0
        %787 = vmatpush.xpose.msra.mxu0 0.0
        %788 = vmatpush.xpose.msra.mxu0 0.0
        %789 = vmatpush.xpose.msra.mxu0 0.0
        %790 = vmatpush.xpose.msra.mxu0 0.0
        %791 = vmatpush.xpose.msra.mxu0 0.0
        %792 = vmatpush.xpose.msra.mxu0 0.0
        %793 = vmatpush.xpose.msra.mxu0 0.0
        %794 = vmatpush.xpose.msra.mxu0 0.0
        %795 = vmatpush.xpose.msra.mxu0 0.0
        %796 = vmatpush.xpose.msra.mxu0 0.0
        %797 = vmatpush.xpose.msra.mxu0 0.0
        %798 = vmatpush.xpose.msra.mxu0 0.0
        %799 = vmatpush.xpose.msra.mxu0 0.0
        %800 = vmatpush.xpose.msra.mxu0 0.0
        %801 = vmatpush.xpose.msra.mxu0 %v784
        %802 = vmatmul.f32.gmra.mxu0 %v782
        %v803 = vpop.f32.mrf.mxu0
        %v804 = vadd.f32 0.0, %v803
        %805 = vdwg.mxu0
        %v806 = vsel %vm780, %v804, -inf
        %807 = vmax.xlane.f32.xlu0 %v806
        %v808 = vpop.xlane.xlu0 %807
        %v809 = vsub.f32 %v804, %v808
        %v810 = vmul.f32 %v809, 1.442695
        %v811 = vpow.pop %v810
        %v812 = vsel %vm780, %v811, 0.0
        %813 = vadd.xlane.f32.xlu0 %v812
        %v814 = vpop.xlane.xlu0 %813
        %815 = vrot.lane.b32.xlu0 %v775, 64
        %v816 = vpop.permute.xlu0 %815
        %v819 = vsel %vm780, %v811, 0
        %821 = vmatpush.msra.mxu0 0.0
        %822 = vmatpush.msra.mxu0 0.0
        %823 = vmatpush.msra.mxu0 0.0
        %824 = vmatpush.msra.mxu0 0.0
        %825 = vmatpush.msra.mxu0 0.0
        %826 = vmatpush.msra.mxu0 0.0
        %827 = vmatpush.msra.mxu0 0.0
        %828 = vmatpush.msra.mxu0 0.0
        %829 = vmatpush.msra.mxu0 0.0
        %830 = vmatpush.msra.mxu0 0.0
        %831 = vmatpush.msra.mxu0 0.0
        %832 = vmatpush.msra.mxu0 0.0
        %833 = vmatpush.msra.mxu0 0.0
        %834 = vmatpush.msra.mxu0 0.0
        %835 = vmatpush.msra.mxu0 0.0
        %836 = vmatpush.msra.mxu0 %v816
        %837 = vmatmul.f32.gmra.mxu0 %v819
        %v838 = vpop.f32.mrf.mxu0
        %v839 = vadd.f32 0.0, %v838
        %840 = vdwg.mxu0
        %v841 = vrcp.pop %v814
        %v842 = vmul.f32 %v839, %v841
        %843 = vst.msk [vmem:[#allocation3] sm:$0xff] %vm780, %v842
        %v844 = vld [vmem:[#allocation2] sm:$0xff]
        %v845 = vmul.f32 %v844, 0.35355338
        %847 = vrot.lane.b32.xlu0 %v845, 120
        %v848 = vpop.permute.xlu0 %847
        %850 = vrot.lane.b32.xlu0 %v844, 88
        %v851 = vpop.permute.xlu0 %850
        %v852 = vsel %vm780, %v848, 0
        %v854 = vsel %vm780, %v851, 0
        %856 = vmatpush.xpose.msra.mxu0 0.0
        %857 = vmatpush.xpose.msra.mxu0 0.0
        %858 = vmatpush.xpose.msra.mxu0 0.0
        %859 = vmatpush.xpose.msra.mxu0 0.0
        %860 = vmatpush.xpose.msra.mxu0 0.0
        %861 = vmatpush.xpose.msra.mxu0 0.0
        %862 = vmatpush.xpose.msra.mxu0 0.0
        %863 = vmatpush.xpose.msra.mxu0 0.0
        %864 = vmatpush.xpose.msra.mxu0 0.0
        %865 = vmatpush.xpose.msra.mxu0 0.0
        %866 = vmatpush.xpose.msra.mxu0 0.0
        %867 = vmatpush.xpose.msra.mxu0 0.0
        %868 = vmatpush.xpose.msra.mxu0 0.0
        %869 = vmatpush.xpose.msra.mxu0 0.0
        %870 = vmatpush.xpose.msra.mxu0 0.0
        %871 = vmatpush.xpose.msra.mxu0 %v854
        %872 = vmatmul.f32.gmra.mxu0 %v852
        %v873 = vpop.f32.mrf.mxu0
        %v874 = vadd.f32 0.0, %v873
        %875 = vdwg.mxu0
        %v876 = vsel %vm780, %v874, -inf
        %877 = vmax.xlane.f32.xlu0 %v876
        %v878 = vpop.xlane.xlu0 %877
        %v879 = vsub.f32 %v874, %v878
        %v880 = vmul.f32 %v879, 1.442695
        %v881 = vpow.pop %v880
        %v882 = vsel %vm780, %v881, 0.0
        %883 = vadd.xlane.f32.xlu0 %v882
        %v884 = vpop.xlane.xlu0 %883
        %885 = vrot.lane.b32.xlu0 %v844, 56
        %v886 = vpop.permute.xlu0 %885
        %v889 = vsel %vm780, %v881, 0
        %891 = vmatpush.msra.mxu0 0.0
        %892 = vmatpush.msra.mxu0 0.0
        %893 = vmatpush.msra.mxu0 0.0
        %894 = vmatpush.msra.mxu0 0.0
        %895 = vmatpush.msra.mxu0 0.0
        %896 = vmatpush.msra.mxu0 0.0
        %897 = vmatpush.msra.mxu0 0.0
        %898 = vmatpush.msra.mxu0 0.0
        %899 = vmatpush.msra.mxu0 0.0
        %900 = vmatpush.msra.mxu0 0.0
        %901 = vmatpush.msra.mxu0 0.0
        %902 = vmatpush.msra.mxu0 0.0
        %903 = vmatpush.msra.mxu0 0.0
        %904 = vmatpush.msra.mxu0 0.0
        %905 = vmatpush.msra.mxu0 0.0
        %906 = vmatpush.msra.mxu0 %v886
        %907 = vmatmul.f32.gmra.mxu0 %v889
        %v908 = vpop.f32.mrf.mxu0
        %v909 = vadd.f32 0.0, %v908
        %910 = vdwg.mxu0
        %v911 = vrcp.pop %v884
        %v912 = vmul.f32 %v909, %v911
        %914 = vrot.lane.b32.xlu0 %v912, 8
        %v915 = vpop.permute.xlu0 %914
        %vm917 = vcmask 130112
        %918 = vst.msk [vmem:[#allocation3] sm:$0xff] %vm917, %v915
        %v919 = vld [vmem:[#allocation2] sm:$0xff]
        %v920 = vmul.f32 %v919, 0.35355338
        %922 = vrot.lane.b32.xlu0 %v920, 112
        %v923 = vpop.permute.xlu0 %922
        %925 = vrot.lane.b32.xlu0 %v919, 80
        %v926 = vpop.permute.xlu0 %925
        %v927 = vsel %vm780, %v923, 0
        %v929 = vsel %vm780, %v926, 0
        %931 = vmatpush.xpose.msra.mxu0 0.0
        %932 = vmatpush.xpose.msra.mxu0 0.0
        %933 = vmatpush.xpose.msra.mxu0 0.0
        %934 = vmatpush.xpose.msra.mxu0 0.0
        %935 = vmatpush.xpose.msra.mxu0 0.0
        %936 = vmatpush.xpose.msra.mxu0 0.0
        %937 = vmatpush.xpose.msra.mxu0 0.0
        %938 = vmatpush.xpose.msra.mxu0 0.0
        %939 = vmatpush.xpose.msra.mxu0 0.0
        %940 = vmatpush.xpose.msra.mxu0 0.0
        %941 = vmatpush.xpose.msra.mxu0 0.0
        %942 = vmatpush.xpose.msra.mxu0 0.0
        %943 = vmatpush.xpose.msra.mxu0 0.0
        %944 = vmatpush.xpose.msra.mxu0 0.0
        %945 = vmatpush.xpose.msra.mxu0 0.0
        %946 = vmatpush.xpose.msra.mxu0 %v929
        %947 = vmatmul.f32.gmra.mxu0 %v927
        %v948 = vpop.f32.mrf.mxu0
        %v949 = vadd.f32 0.0, %v948
        %950 = vdwg.mxu0
        %v951 = vsel %vm780, %v949, -inf
        %952 = vmax.xlane.f32.xlu0 %v951
        %v953 = vpop.xlane.xlu0 %952
        %v954 = vsub.f32 %v949, %v953
        %v955 = vmul.f32 %v954, 1.442695
        %v956 = vpow.pop %v955
        %v957 = vsel %vm780, %v956, 0.0
        %958 = vadd.xlane.f32.xlu0 %v957
        %v959 = vpop.xlane.xlu0 %958
        %960 = vrot.lane.b32.xlu0 %v919, 48
        %v961 = vpop.permute.xlu0 %960
        %v964 = vsel %vm780, %v956, 0
        %966 = vmatpush.msra.mxu0 0.0
        %967 = vmatpush.msra.mxu0 0.0
        %968 = vmatpush.msra.mxu0 0.0
        %969 = vmatpush.msra.mxu0 0.0
        %970 = vmatpush.msra.mxu0 0.0
        %971 = vmatpush.msra.mxu0 0.0
        %972 = vmatpush.msra.mxu0 0.0
        %973 = vmatpush.msra.mxu0 0.0
        %974 = vmatpush.msra.mxu0 0.0
        %975 = vmatpush.msra.mxu0 0.0
        %976 = vmatpush.msra.mxu0 0.0
        %977 = vmatpush.msra.mxu0 0.0
        %978 = vmatpush.msra.mxu0 0.0
        %979 = vmatpush.msra.mxu0 0.0
        %980 = vmatpush.msra.mxu0 0.0
        %981 = vmatpush.msra.mxu0 %v961
        %982 = vmatmul.f32.gmra.mxu0 %v964
        %v983 = vpop.f32.mrf.mxu0
        %v984 = vadd.f32 0.0, %v983
        %985 = vdwg.mxu0
        %v986 = vrcp.pop %v959
        %v987 = vmul.f32 %v984, %v986
        %989 = vrot.lane.b32.xlu0 %v987, 16
        %v990 = vpop.permute.xlu0 %989
        %vm992 = vcmask 195712
        %993 = vst.msk [vmem:[#allocation3] sm:$0xff] %vm992, %v990
        %v994 = vld [vmem:[#allocation2] sm:$0xff]
        %v995 = vmul.f32 %v994, 0.35355338
        %997 = vrot.lane.b32.xlu0 %v995, 104
        %v998 = vpop.permute.xlu0 %997
        %1000 = vrot.lane.b32.xlu0 %v994, 72
        %v1001 = vpop.permute.xlu0 %1000
        %v1002 = vsel %vm780, %v998, 0
        %v1004 = vsel %vm780, %v1001, 0
        %1006 = vmatpush.xpose.msra.mxu0 0.0
        %1007 = vmatpush.xpose.msra.mxu0 0.0
        %1008 = vmatpush.xpose.msra.mxu0 0.0
        %1009 = vmatpush.xpose.msra.mxu0 0.0
        %1010 = vmatpush.xpose.msra.mxu0 0.0
        %1011 = vmatpush.xpose.msra.mxu0 0.0
        %1012 = vmatpush.xpose.msra.mxu0 0.0
        %1013 = vmatpush.xpose.msra.mxu0 0.0
        %1014 = vmatpush.xpose.msra.mxu0 0.0
        %1015 = vmatpush.xpose.msra.mxu0 0.0
        %1016 = vmatpush.xpose.msra.mxu0 0.0
        %1017 = vmatpush.xpose.msra.mxu0 0.0
        %1018 = vmatpush.xpose.msra.mxu0 0.0
        %1019 = vmatpush.xpose.msra.mxu0 0.0
        %1020 = vmatpush.xpose.msra.mxu0 0.0
        %1021 = vmatpush.xpose.msra.mxu0 %v1004
        %1022 = vmatmul.f32.gmra.mxu0 %v1002
        %v1023 = vpop.f32.mrf.mxu0
        %v1024 = vadd.f32 0.0, %v1023
        %1025 = vdwg.mxu0
        %v1026 = vsel %vm780, %v1024, -inf
        %1027 = vmax.xlane.f32.xlu0 %v1026
        %v1028 = vpop.xlane.xlu0 %1027
        %v1029 = vsub.f32 %v1024, %v1028
        %v1030 = vmul.f32 %v1029, 1.442695
        %v1031 = vpow.pop %v1030
        %v1032 = vsel %vm780, %v1031, 0.0
        %1033 = vadd.xlane.f32.xlu0 %v1032
        %v1034 = vpop.xlane.xlu0 %1033
        %1035 = vrot.lane.b32.xlu0 %v994, 40
        %v1036 = vpop.permute.xlu0 %1035
        %v1039 = vsel %vm780, %v1031, 0
        %1041 = vmatpush.msra.mxu0 0.0
        %1042 = vmatpush.msra.mxu0 0.0
        %1043 = vmatpush.msra.mxu0 0.0
        %1044 = vmatpush.msra.mxu0 0.0
        %1045 = vmatpush.msra.mxu0 0.0
        %1046 = vmatpush.msra.mxu0 0.0
        %1047 = vmatpush.msra.mxu0 0.0
        %1048 = vmatpush.msra.mxu0 0.0
        %1049 = vmatpush.msra.mxu0 0.0
        %1050 = vmatpush.msra.mxu0 0.0
        %1051 = vmatpush.msra.mxu0 0.0
        %1052 = vmatpush.msra.mxu0 0.0
        %1053 = vmatpush.msra.mxu0 0.0
        %1054 = vmatpush.msra.mxu0 0.0
        %1055 = vmatpush.msra.mxu0 0.0
        %1056 = vmatpush.msra.mxu0 %v1036
        %1057 = vmatmul.f32.gmra.mxu0 %v1039
        %v1058 = vpop.f32.mrf.mxu0
        %v1059 = vadd.f32 0.0, %v1058
        %1060 = vdwg.mxu0
        %v1061 = vrcp.pop %v1034
        %v1062 = vmul.f32 %v1059, %v1061
        %1064 = vrot.lane.b32.xlu0 %v1062, 24
        %v1065 = vpop.permute.xlu0 %1064
        %vm1067 = vcmask 261312
        %1068 = vst.msk [vmem:[#allocation3] sm:$0xff] %vm1067, %v1065
        %v1069 = vld [vmem:[#allocation3] sm:$0xff]
        %v1070 = vld [vmem:[%s668] sm:$0xff]
        %v1071 = vld [vmem:[%s668 + $0x8] sm:$0xff]
        %v1072 = vld [vmem:[%s668 + $0x10] sm:$0xff]
        %v1073 = vld [vmem:[%s668 + $0x18] sm:$0xff]
        %v1074 = vld [vmem:[%s671] sm:$0x1]
        %v1076 = vperm.slane %v1074, 0
        %v1079 = vsel %vm704, %v1069, 0
        %1081 = vmatpush.msra.mxu0 0.0
        %1082 = vmatpush.msra.mxu0 0.0
        %1083 = vmatpush.msra.mxu0 0.0
        %1084 = vmatpush.msra.mxu0 0.0
        %1085 = vmatpush.msra.mxu0 0.0
        %1086 = vmatpush.msra.mxu0 0.0
        %1087 = vmatpush.msra.mxu0 0.0
        %1088 = vmatpush.msra.mxu0 0.0
        %1089 = vmatpush.msra.mxu0 0.0
        %1090 = vmatpush.msra.mxu0 0.0
        %1091 = vmatpush.msra.mxu0 0.0
        %1092 = vmatpush.msra.mxu0 0.0
        %1093 = vmatpush.msra.mxu0 %v1073
        %1094 = vmatpush.msra.mxu0 %v1072
        %1095 = vmatpush.msra.mxu0 %v1071
        %1096 = vmatpush.msra.mxu0 %v1070
        %1097 = vmatmul.f32.gmra.mxu0 %v1079
        %v1098 = vpop.f32.mrf.mxu0
        %v1099 = vadd.f32 %v1076, %v1098
        %1100 = vdwg.mxu0
        %v1101 = vadd.f32 %v701, %v1099
        %v1102 = vld [vmem:[%s674] sm:$0x1]
        %v1103 = vld [vmem:[%s677] sm:$0x1]
        %v1104 = vsel %vm704, %v1101, 0.0
        %1105 = vadd.xlane.f32.xlu0 %v1104
        %v1106 = vpop.xlane.xlu0 %1105
        %v1107 = vmul.f32 %v1106, %v714
        %v1108 = vsub.f32 %v1101, %v1107
        %v1109 = vmul.f32 %v1108, %v1108
        %v1110 = vsel %vm704, %v1109, 0.0
        %1111 = vadd.xlane.f32.xlu0 %v1110
        %v1112 = vpop.xlane.xlu0 %1111
        %v1113 = vmul.f32 %v1112, %v714
        %v1114 = vadd.f32 %v1113, 1e-05
        %v1115 = vrsqrt.pop %v1114
        %v1116 = vmul.f32 %v1115, %v1114
        %v1117 = vmul.f32 %v1116, %v1115
        %v1118 = vmul.f32 0.5, %v1117
        %v1119 = vsub.f32 1.5, %v1118
        %v1120 = vmul.f32 %v1115, %v1119
        %vm1121 = vweird.f32 %v1114
        %vm1122 = vweird.f32 %v1115
        %vm1123 = vmor %vm1121, %vm1122
        %v1124 = vsel %vm1123, %v1115, %v1120
        %v1125 = vmul.f32 %v1108, %v1124
        %v1127 = vperm.slane %v1102, 0
        %v1129 = vmul.f32 %v1125, %v1127
        %v1131 = vperm.slane %v1103, 0
        %v1133 = vadd.f32 %v1129, %v1131
        %v1134 = vld [vmem:[%s682] sm:$0xff]
        %v1135 = vld [vmem:[%s682 + $0x8] sm:$0xff]
        %v1136 = vld [vmem:[%s682 + $0x10] sm:$0xff]
        %v1137 = vld [vmem:[%s682 + $0x18] sm:$0xff]
        %v1138 = vld [vmem:[%s685] sm:$0x1]
        %v1140 = vperm.slane %v1138, 0
        %v1143 = vsel %vm704, %v1133, 0
        %1145 = vmatpush.msra.mxu0 0.0
        %1146 = vmatpush.msra.mxu0 0.0
        %1147 = vmatpush.msra.mxu0 0.0
        %1148 = vmatpush.msra.mxu0 0.0
        %1149 = vmatpush.msra.mxu0 0.0
        %1150 = vmatpush.msra.mxu0 0.0
        %1151 = vmatpush.msra.mxu0 0.0
        %1152 = vmatpush.msra.mxu0 0.0
        %1153 = vmatpush.msra.mxu0 0.0
        %1154 = vmatpush.msra.mxu0 0.0
        %1155 = vmatpush.msra.mxu0 0.0
        %1156 = vmatpush.msra.mxu0 0.0
        %1157 = vmatpush.msra.mxu0 %v1137
        %1158 = vmatpush.msra.mxu0 %v1136
        %1159 = vmatpush.msra.mxu0 %v1135
        %1160 = vmatpush.msra.mxu0 %v1134
        %1161 = vmatmul.f32.gmra.mxu0 %v1143
        %v1162 = vpop.f32.mrf.mxu0
        %v1163 = vadd.f32 %v1140, %v1162
        %1164 = vdwg.mxu0
        %v1165 = vmul.f32 %v1163, 0.5
        %v1166 = vmul.f32 %v1163, 0.70710677
        %vm1167 = vcmp.ge.f32.partialorder %v1166, 0.0
        %v1168 = vsel %vm1167, 1.0, -1.0
        %v1169 = vand.u32 2147483647, %v1166
        %v1170 = vmul.f32 %v1169, 0.3275911
        %v1171 = vadd.f32 %v1170, 1.0
        %v1172 = vrcp.pop %v1171
        %v1173 = vmul.f32 %v1171, %v1172
        %v1174 = vsub.f32 1.0, %v1173
        %v1175 = vmul.f32 %v1172, %v1174
        %v1176 = vadd.f32 %v1172, %v1175
        %vm1177 = vweird.f32 %v1171
        %vm1178 = vweird.f32 %v1172
        %vm1179 = vmor %vm1177, %vm1178
        %v1180 = vsel %vm1179, %v1172, %v1176
        %v1181 = vand.u32 2147483647, %v1171
        %vm1182 = vcmp.eq.f32.partialorder %v1181, 8.507059e+37
        %v1183 = vand.u32 %v1171, 2147483648
        %v1184 = vor.u32 1.1754944e-38, %v1183
        %v1185 = vsel %vm1182, %v1184, %v1180
        %v1186 = vmul.f32 1.0, %v1185
        %v1187 = vmul.f32 %v1186, 1.0614054
        %v1188 = vadd.f32 %v1187, -1.4531521
        %v1189 = vmul.f32 %v1188, %v1186
        %v1190 = vadd.f32 %v1189, 1.4214138
        %v1191 = vmul.f32 %v1190, %v1186
        %v1192 = vadd.f32 %v1191, -0.28449672
        %v1193 = vmul.f32 %v1192, %v1186
        %v1194 = vadd.f32 %v1193, 0.2548296
        %v1195 = vmul.f32 %v1194, %v1186
        %v1196 = vsub.f32 0.0, %v1169
        %v1197 = vmul.f32 %v1196, %v1169
        %v1198 = vmul.f32 %v1197, 1.442695
        %v1199 = vpow.pop %v1198
        %v1200 = vmul.f32 %v1195, %v1199
        %v1201 = vsub.f32 1.0, %v1200
        %v1202 = vmul.f32 %v1168, %v1201
        %v1203 = vadd.f32 %v1202, 1.0
        %v1204 = vmul.f32 %v1165, %v1203
        %v1205 = vld [vmem:[%s690] sm:$0xff]
        %v1206 = vld [vmem:[%s690 + $0x8] sm:$0xff]
        %v1207 = vld [vmem:[%s690 + $0x10] sm:$0xff]
        %v1208 = vld [vmem:[%s690 + $0x18] sm:$0xff]
        %v1209 = vld [vmem:[%s690 + $0x20] sm:$0xff]
        %v1210 = vld [vmem:[%s690 + $0x28] sm:$0xff]
        %v1211 = vld [vmem:[%s690 + $0x30] sm:$0xff]
        %v1212 = vld [vmem:[%s690 + $0x38] sm:$0xff]
        %v1213 = vld [vmem:[%s690 + $0x40] sm:$0xff]
        %v1214 = vld [vmem:[%s690 + $0x48] sm:$0xff]
        %v1215 = vld [vmem:[%s690 + $0x50] sm:$0xff]
        %v1216 = vld [vmem:[%s690 + $0x58] sm:$0xff]
        %v1217 = vld [vmem:[%s690 + $0x60] sm:$0xff]
        %v1218 = vld [vmem:[%s690 + $0x68] sm:$0xff]
        %v1219 = vld [vmem:[%s690 + $0x70] sm:$0xff]
        %v1220 = vld [vmem:[%s690 + $0x78] sm:$0xff]
        %1221 = vmatpush.msra.mxu0 %v1220
        %1222 = vmatpush.msra.mxu0 %v1219
        %1223 = vmatpush.msra.mxu0 %v1218
        %1224 = vmatpush.msra.mxu0 %v1217
        %1225 = vmatpush.msra.mxu0 %v1216
        %1226 = vmatpush.msra.mxu0 %v1215
        %1227 = vmatpush.msra.mxu0 %v1214
        %1228 = vmatpush.msra.mxu0 %v1213
        %1229 = vmatpush.msra.mxu0 %v1212
        %1230 = vmatpush.msra.mxu0 %v1211
        %1231 = vmatpush.msra.mxu0 %v1210
        %1232 = vmatpush.msra.mxu0 %v1209
        %1233 = vmatpush.msra.mxu0 %v1208
        %1234 = vmatpush.msra.mxu0 %v1207
        %1235 = vmatpush.msra.mxu0 %v1206
        %1236 = vmatpush.msra.mxu0 %v1205
        %1237 = vmatmul.f32.gmra.mxu0 %v1204
        %v1238 = vpop.f32.mrf.mxu0
        %v1239 = vadd.f32 0.0, %v1238
        %1240 = vdwg.mxu0
        %v1241 = vadd.f32 %v1101, %v1239
        %v1242 = vld [vmem:[%s693] sm:$0x1]
        %v1244 = vperm.slane %v1242, 0
        %v1246 = vadd.f32 %v1241, %v1244
        %p1247 = scmp.lt.s32.totalorder %s34, 1
        // Predicated region
        $region85: #{tpu_custom_call.1} parent=79 // pred_check
          %p1248 = pneg %p1247
        $region86: #{tpu_custom_call.1} parent=79 // pred_check_branch
          %1250 = sbr.rel (%p1248) target = $region88
        $region87: #{tpu_custom_call.1} parent=79 // pred_region
          %1251 = vst.msk [vmem:[%s645] sm:$0xff] %vm704, %v1246
        $region88: #{tpu_custom_call.1} parent=79 // pred_fallthru
          _
        %p1252 = scmp.eq.s32.totalorder %s34, 1
        // Predicated region
        $region89: #{tpu_custom_call.1} parent=79 // pred_check
          %p1253 = pneg %p1252
        $region90: #{tpu_custom_call.1} parent=79 // pred_check_branch
          %1255 = sbr.rel (%p1253) target = $region92
        $region91: #{tpu_custom_call.1} parent=79 // pred_region
          %v1256 = vld [vmem:[%s13] sm:$0x1]
          %v1257 = vld [vmem:[%s14] sm:$0x1]
          %v1258 = vsel %vm704, %v1246, 0.0
          %1259 = vadd.xlane.f32.xlu0 %v1258
          %v1260 = vpop.xlane.xlu0 %1259
          %v1261 = vmul.f32 %v1260, %v714
          %v1262 = vsub.f32 %v1246, %v1261
          %v1263 = vmul.f32 %v1262, %v1262
          %v1264 = vsel %vm704, %v1263, 0.0
          %1265 = vadd.xlane.f32.xlu0 %v1264
          %v1266 = vpop.xlane.xlu0 %1265
          %v1267 = vmul.f32 %v1266, %v714
          %v1268 = vadd.f32 %v1267, 1e-05
          %v1269 = vrsqrt.pop %v1268
          %v1270 = vmul.f32 %v1269, %v1268
          %v1271 = vmul.f32 %v1270, %v1269
          %v1272 = vmul.f32 0.5, %v1271
          %v1273 = vsub.f32 1.5, %v1272
          %v1274 = vmul.f32 %v1269, %v1273
          %vm1275 = vweird.f32 %v1268
          %vm1276 = vweird.f32 %v1269
          %vm1277 = vmor %vm1275, %vm1276
          %v1278 = vsel %vm1277, %v1269, %v1274
          %v1279 = vmul.f32 %v1262, %v1278
          %v1281 = vperm.slane %v1256, 0
          %v1283 = vmul.f32 %v1279, %v1281
          %v1285 = vperm.slane %v1257, 0
          %v1287 = vadd.f32 %v1283, %v1285
          %1288 = vst.msk [vmem:[%s645] sm:$0xff] %vm704, %v1287
        $region92: #{tpu_custom_call.1} parent=79 // pred_fallthru
          _
        %s1289 = sand.u32 %s429, 1
        %s1290 = scalar_lea.sflag [#allocation5], %s1289
        %s1291 = sand.u32 %s429, 1
        %s1292 = smul.addr %s1291, 8
        %s1293 = scalar_lea.vmem [#allocation4], %s1292
        // Predicated region
        $region93: #{tpu_custom_call.1} parent=79 // pred_check
          %p1294 = pneg %p439
        $region94: #{tpu_custom_call.1} parent=79 // pred_check_branch
          %1296 = sbr.rel (%p1294) target = $region96
        $region95: #{tpu_custom_call.1} parent=79 // pred_region
          %1298 = vsyncadd %s1290, 0
          %s1299 = smul.addr %s33, 8
          %s1300 = scalar_lea.hbm %s15, %s1299
          %s1302 = sshll.u32 %s1293, 4
          %s1303 = int_to_ptr.vmem [resolvable:$true] %s1302
          %s1304 = sshll.u32 %s1300, 4
          %s1305 = int_to_ptr.hbm [resolvable:$true] %s1304
          %1307 = dma.vmem_to_hbm [thread:$0]  %s1303, 128, %s1305, %s1290
        $region96: #{tpu_custom_call.1} parent=79 // pred_fallthru
          _
      $region80: #{tpu_custom_call.1} parent=5 // pred_fallthru
        _
      %p1308 = scmp.le.s32.totalorder 2, %s24
      // Predicated region
      $region97: #{tpu_custom_call.1} parent=5 // pred_check
        %p1309 = pneg %p1308
      $region98: #{tpu_custom_call.1} parent=5 // pred_check_branch
        %1311 = sbr.rel (%p1309) target = $region100
      $region99: #{tpu_custom_call.1} parent=5 // pred_region
        %s1312 = ssub.s32 %s24, 2
        // Predicated region
        $region101: #{tpu_custom_call.1} parent=99 // pred_check
          %p1313 = pneg %p445
        $region102: #{tpu_custom_call.1} parent=99 // pred_check_branch
          %1315 = sbr.rel (%p1313) target = $region104
        $region103: #{tpu_custom_call.1} parent=99 // pred_region
          %s1316 = sand.u32 %s430, 1
          %s1317 = scalar_lea.sflag [#allocation5], %s1316
          %s1318 = sand.u32 %s430, 1
          %s1319 = smul.addr %s1318, 8
          %s1320 = scalar_lea.vmem [#allocation4], %s1319
          %1322 = dma.done %s1317, 128
        $region104: #{tpu_custom_call.1} parent=99 // pred_fallthru
          _
      $region100: #{tpu_custom_call.1} parent=5 // pred_fallthru
        _
    $region6: #{tpu_custom_call.1} parent=1 // loop_footer
      %s28 = sadd.s32 1, %s24
    $region7: #{tpu_custom_call.1} parent=1 // loop_footer_branch
      %23 = sbr.rel target = $region3
    $region8: #{tpu_custom_call.1} parent=1 // loop_exit
      _
    %1323 = vsyncpa [#allocation5], 1
    %s1324 = scalar_lea.sflag [#allocation5], 1
    %1325 = vsyncpa %s1324, 1

</llo_original>
